<compile_context>
chip_gen: v5e
topology: v5e:2x2
jax: 0.10.0
libtpu: 0.0.40
codegen_flags: <defaults>
</compile_context>

<pallas_src>
import functools

import numpy as np
import jax
import jax.numpy as jnp
from jax.experimental import pallas as pl
from jax.experimental.pallas import tpu as pltpu

EPS = 1e-5
_LANE = 128
_SUBLANE_ALIGN = 16      # bf16 sublane packing -> keep packed-chunk row offsets 16-aligned
_SHIFT_ROW_STRIDE = 8    # one shift row per layer, 8-aligned row starts


# ----------------------------------------------------------------------------
# Small static helpers
# ----------------------------------------------------------------------------
def _round_up(x, m):
    return (x + m - 1) // m * m


def _reflect(p, size):
    """Source index for reflect-pad(1): padded index p in [0, size + 1]."""
    if p == 0:
        return 1
    if p == size + 1:
        return size - 2
    return p - 1


def _conv_out(sz, k, stride):
    return (sz + 2 - k) // stride + 1


# ----------------------------------------------------------------------------
# The single fused Pallas kernel
# ----------------------------------------------------------------------------
def _encoder_kernel(x_ref, a_ref, b_ref, s_ref, o_ref, *,
                    layout, n, dem_ch, rad_ch, data_fusion, param_dtype):
    if param_dtype == jnp.float32:
        prec = jax.lax.Precision.HIGHEST        # exact f32 (multi-pass MXU)
    else:
        prec = jax.lax.Precision.DEFAULT        # single-pass bf16 MXU

    def conv(x, l):
        # x: (h_in, n*w_in*cin) f32.  Conv(reflect pad 1, stride s) + folded BN:
        #   y = sum_kh (A_stack @ x)[kh] @ B[kh] + shift_row
        a_off, h_in, k, ho, ho_pad, b_offs, b_rows, cols = layout[l]
        assert x.shape == (h_in, b_rows), (l, x.shape, (h_in, b_rows))
        a_mat = a_ref[a_off:a_off + k * ho_pad, 0:h_in]          # (k*ho_pad, h_in)
        t = jnp.dot(a_mat, x.astype(param_dtype),
                    preferred_element_type=jnp.float32, precision=prec)
        acc = None
        for kh in range(k):
            t_kh = t[kh * ho_pad:(kh + 1) * ho_pad, :].astype(param_dtype)
            b_kh = b_ref[b_offs[kh]:b_offs[kh] + b_rows, 0:cols]  # (b_rows, cols)
            part = jnp.dot(t_kh, b_kh,
                           preferred_element_type=jnp.float32, precision=prec)
            acc = part if acc is None else acc + part
        shift = s_ref[l * _SHIFT_ROW_STRIDE:l * _SHIFT_ROW_STRIDE + 1, 0:cols]
        # conv bias + BatchNorm folded into `shift`.  LeakyReLU(True) has
        # negative_slope == 1.0 -> identity, so no activation op is emitted.
        return acc[:ho, :] + shift

    # Split channels in-kernel and pack the batch along the lane axis:
    # dem/rad: (H, N*W)   with column layout [sample, w].
    dem = jnp.concatenate([x_ref[i, dem_ch, :, :] for i in range(n)], axis=-1)
    rad = jnp.concatenate([x_ref[i, rad_ch, :, :] for i in range(n)], axis=-1)

    a1 = conv(conv(dem, 0), 1)            # sc2_dem(c1_dem(.))
    a2 = conv(conv(a1, 2), 3)             # sc4_dem(c3_dem(.))
    x1 = conv(conv(rad, 4), 5)            # sc2_rad(c1_rad(.))
    if data_fusion:
        x2 = conv(conv(x1 + a1, 6), 7)    # sc4(c3(.)) with fused residual add
        x3 = conv(x2 + a2, 8)             # c5(.)
    else:
        x2 = conv(conv(x1, 6), 7)
        x3 = conv(x2, 8)

    o_ref[...] = x3.astype(o_ref.dtype)   # (hf, N*wf*cf) -- lane-dense store


# ----------------------------------------------------------------------------
# Parameters (deterministic synthetic init mirroring __init__)
# ----------------------------------------------------------------------------
def make_conv_bn_params(key, cin, cout, k):
    kw_, kb, kg, kbt = jax.random.split(key, 4)
    # kaiming_normal_(mode='fan_out', nonlinearity='leaky_relu')
    fan_out = cout * k * k
    gain = (2.0 / (1.0 + 0.01 ** 2)) ** 0.5
    w = (gain / fan_out ** 0.5) * jax.random.normal(kw_, (k, k, cin, cout),
                                                    jnp.float32)
    # default PyTorch conv bias init
    fan_in = cin * k * k
    bound = 1.0 / (fan_in ** 0.5)
    b = jax.random.uniform(kb, (cout,), jnp.float32, -bound, bound)
    # BatchNorm affine params + fresh running stats (mean=0, var=1)
    gamma = 1.0 + 0.1 * jax.random.normal(kg, (cout,), jnp.float32)
    beta = 0.05 * jax.random.normal(kbt, (cout,), jnp.float32)
    running_mean = jnp.zeros((cout,), jnp.float32)
    running_var = jnp.ones((cout,), jnp.float32)
    scale = gamma / jnp.sqrt(running_var + EPS)
    shift = (b - running_mean) * scale + beta    # conv bias folded into shift
    return dict(w=w, scale=scale, shift=shift)


# ----------------------------------------------------------------------------
# Pre-lower each conv layer to (A_stack, batched block-diagonal B, shift row)
# ----------------------------------------------------------------------------
def _build_layer(p, h, w, k, stride, n):
    wgt, scale, shift = p["w"], p["scale"], p["shift"]       # wgt: (k,k,cin,cout)
    _, _, cin, cout = wgt.shape
    ho, wo = _conv_out(h, k, stride), _conv_out(w, k, stride)
    ho_pad = _round_up(ho, 8)

    # Stacked row selector: A_stack[kh*ho_pad + i, hs] = 1 iff hs == reflect(stride*i+kh)
    a_stack = np.zeros((k * ho_pad, h), np.float32)
    for kh in range(k):
        for i in range(ho):
            a_stack[kh * ho_pad + i, _reflect(stride * i + kh, h)] = 1.0

    # Column selector: S[ws, kw, j] = 1 iff ws == reflect(stride*j+kw)
    s_sel = np.zeros((w, k, wo), np.float32)
    for kw in range(k):
        for j in range(wo):
            s_sel[_reflect(stride * j + kw, w), kw, j] = 1.0

    w_scaled = np.asarray(wgt * scale[None, None, None, :], np.float32)
    # B_single[kh, ws*cin + c, j*cout + o] = sum_kw S[ws,kw,j] * w_scaled[kh,kw,c,o]
    b_single = np.einsum("wkj,hkco->hwcjo", s_sel, w_scaled)
    b_single = b_single.reshape(k, w * cin, wo * cout)
    # Batch block-diagonal so a single 2-D matmul covers all N lane-packed samples.
    eye = np.eye(n, dtype=np.float32)
    b_batched = np.einsum("st,krc->ksrtc", eye, b_single)
    b_batched = b_batched.reshape(k, n * w * cin, n * wo * cout)

    shift_row = np.tile(np.asarray(shift, np.float32), n * wo)   # (n*wo*cout,)
    return dict(A=a_stack, B=b_batched, shift=shift_row, k=k, h=h, w=w,
                cin=cin, cout=cout, ho=ho, wo=wo, ho_pad=ho_pad)


def prepare_encoder(params, h, w, n, *, param_dtype=jnp.bfloat16):
    h2, w2 = _conv_out(h, 4, 2), _conv_out(w, 4, 2)
    h3, w3 = _conv_out(h2, 4, 2), _conv_out(w2, 4, 2)
    for s in (h, w, h2, w2, h3, w3):
        assert s >= 2, "reflect-pad(1) requires every stage size >= 2"

    order = [("c1_dem", h, w, 3, 1), ("sc2_dem", h, w, 4, 2),
             ("c3_dem", h2, w2, 3, 1), ("sc4_dem", h2, w2, 4, 2),
             ("c1_rad", h, w, 3, 1), ("sc2_rad", h, w, 4, 2),
             ("c3", h2, w2, 3, 1), ("sc4", h2, w2, 4, 2),
             ("c5", h3, w3, 3, 1)]
    layers = [_build_layer(params[name], hh, ww, k, s, n)
              for (name, hh, ww, k, s) in order]

    max_h = max(L["h"] for L in layers)
    max_cols = _round_up(max(n * L["wo"] * L["cout"] for L in layers), _LANE)

    # ---- A pack: all stacked row-selectors -> one DMA.
    a_chunks, a_offs, off = [], [], 0
    for L in layers:
        rows = L["A"].shape[0]
        rows_pad = _round_up(rows, _SUBLANE_ALIGN)
        chunk = np.zeros((rows_pad, max_h), np.float32)
        chunk[:rows, :L["h"]] = L["A"]
        a_chunks.append(chunk)
        a_offs.append(off)
        off += rows_pad
    a_pack = jnp.asarray(np.concatenate(a_chunks, axis=0), dtype=param_dtype)

    # ---- B pack: all BN-folded, batch-block-diagonal weight matrices -> one DMA.
    b_chunks, b_offsets, off = [], [], 0
    for L in layers:
        rows = n * L["w"] * L["cin"]
        cols = n * L["wo"] * L["cout"]
        rows_pad = _round_up(rows, _SUBLANE_ALIGN)
        offs_l = []
        for kh in range(L["k"]):
            chunk = np.zeros((rows_pad, max_cols), np.float32)
            chunk[:rows, :cols] = L["B"][kh]
            b_chunks.append(chunk)
            offs_l.append(off)
            off += rows_pad
        b_offsets.append(tuple(offs_l))
    b_pack = jnp.asarray(np.concatenate(b_chunks, axis=0), dtype=param_dtype)

    # ---- shift pack (kept f32; added after the f32 accumulation).
    s_rows = _round_up(len(layers) * _SHIFT_ROW_STRIDE, 8)
    s_np = np.zeros((s_rows, max_cols), np.float32)
    for l, L in enumerate(layers):
        cols = n * L["wo"] * L["cout"]
        s_np[l * _SHIFT_ROW_STRIDE, :cols] = L["shift"]
    s_pack = jnp.asarray(s_np)

    layout = tuple((a_offs[l], L["h"], L["k"], L["ho"], L["ho_pad"],
                    b_offsets[l], n * L["w"] * L["cin"],
                    n * L["wo"] * L["cout"])
                   for l, L in enumerate(layers))
    last = layers[-1]
    meta = (last["ho"], last["wo"], last["cout"])        # (hf, wf, cf)

    total = (a_pack.size * a_pack.dtype.itemsize
             + b_pack.size * b_pack.dtype.itemsize
             + s_pack.size * 4)
    # TODO(synk): for large H,W tile the B columns (W-tiled BlockSpec) instead
    # of the all-resident design; v7x has only 64 MiB of VMEM.
    assert total < 40 * (1 << 20), f"packed params too large for VMEM: {total} B"
    return (a_pack, b_pack, s_pack), layout, meta


# ----------------------------------------------------------------------------
# Encoder forward: one pallas_call for the whole network
# ----------------------------------------------------------------------------
def encoder_forward(x_nchw, a_pack, b_pack, s_pack, *, layout, meta, n,
                    rad_input=True, data_fusion=True,
                    param_dtype=jnp.bfloat16):
    hf, wf, cf = meta
    out_cols = n * wf * cf
    dem_ch = 0 if rad_input else 1
    kern = functools.partial(
        _encoder_kernel, layout=layout, n=n, dem_ch=dem_ch, rad_ch=1 - dem_ch,
        data_fusion=data_fusion, param_dtype=param_dtype)
    vmem = pl.BlockSpec(memory_space=pltpu.MemorySpace.VMEM)
    out2d = pl.pallas_call(
        kern,
        out_shape=jax.ShapeDtypeStruct((hf, out_cols), jnp.float32),
        in_specs=[vmem, vmem, vmem, vmem],      # 4 DMAs total (input + 3 packs)
        out_specs=vmem,
    )(x_nchw.astype(jnp.float32), a_pack, b_pack, s_pack)
    # Layout plumbing only: (hf, N*wf*cf) lane-dense slab -> NCHW like PyTorch.
    out = out2d.reshape(hf, n, wf, cf)
    return jnp.transpose(out, (1, 3, 0, 2))


# ----------------------------------------------------------------------------
# Pure-JAX reference (exact f32, for correctness check only)
# ----------------------------------------------------------------------------
def _ref_conv(x, p, k, stride):
    xp = jnp.pad(x, ((0, 0), (1, 1), (1, 1), (0, 0)), mode="reflect")
    y = jax.lax.conv_general_dilated(
        xp, p["w"], window_strides=(stride, stride), padding="VALID",
        dimension_numbers=("NHWC", "HWIO", "NHWC"),
        precision=jax.lax.Precision.HIGHEST)
    return y * p["scale"] + p["shift"]            # LeakyReLU(1.0) == identity


def _ref_forward(x_nchw, params, rad_input=True, data_fusion=True):
    x = jnp.transpose(x_nchw, (0, 2, 3, 1)).astype(jnp.float32)
    alt, rad = x[..., 0:1], x[..., 1:2]
    dem_in = alt if rad_input else rad
    rad_in = rad if rad_input else alt
    a1 = _ref_conv(_ref_conv(dem_in, params["c1_dem"], 3, 1), params["sc2_dem"], 4, 2)
    a2 = _ref_conv(_ref_conv(a1, params["c3_dem"], 3, 1), params["sc4_dem"], 4, 2)
    x1 = _ref_conv(_ref_conv(rad_in, params["c1_rad"], 3, 1), params["sc2_rad"], 4, 2)
    if data_fusion:
        x2 = _ref_conv(_ref_conv(x1 + a1, params["c3"], 3, 1), params["sc4"], 4, 2)
        x3 = _ref_conv(x2 + a2, params["c5"], 3, 1)
    else:
        x2 = _ref_conv(_ref_conv(x1, params["c3"], 3, 1), params["sc4"], 4, 2)
        x3 = _ref_conv(x2, params["c5"], 3, 1)
    return jnp.transpose(x3, (0, 3, 1, 2))


# ----------------------------------------------------------------------------
if __name__ == "__main__":
    key = jax.random.PRNGKey(0)
    keys = jax.random.split(key, 10)

    encoder_conv_width = [4, 8, 8, 16, 16]
    Wd = encoder_conv_width

    params = {
        "c1_rad":  make_conv_bn_params(keys[0], 1,     Wd[0], 3),
        "sc2_rad": make_conv_bn_params(keys[1], Wd[0], Wd[1], 4),
        "c3":      make_conv_bn_params(keys[2], Wd[1], Wd[2], 3),
        "sc4":     make_conv_bn_params(keys[3], Wd[2], Wd[3], 4),
        "c5":      make_conv_bn_params(keys[4], Wd[3], Wd[4], 3),
        "c1_dem":  make_conv_bn_params(keys[5], 1,     Wd[0], 3),
        "sc2_dem": make_conv_bn_params(keys[6], Wd[0], Wd[1], 4),
        "c3_dem":  make_conv_bn_params(keys[7], Wd[1], Wd[2], 3),
        "sc4_dem": make_conv_bn_params(keys[8], Wd[2], Wd[3], 4),
    }

    # input: (batch=2, channels=2 [alt, rad], H=16, W=16), NCHW like PyTorch
    N, H, W = 2, 16, 16
    x = jax.random.normal(keys[9], (N, 2, H, W), jnp.float32)

    (a_pack, b_pack, s_pack), layout, meta = prepare_encoder(
        params, H, W, N, param_dtype=jnp.bfloat16)

    fwd = jax.jit(functools.partial(
        encoder_forward, layout=layout, meta=meta, n=N,
        rad_input=True, data_fusion=True, param_dtype=jnp.bfloat16))
    out = jax.block_until_ready(fwd(x, a_pack, b_pack, s_pack))

    assert out.shape == (N, Wd[4], 4, 4), out.shape
    assert bool(jnp.all(jnp.isfinite(out)))

    ref = _ref_forward(x, params, rad_input=True, data_fusion=True)
    scale = float(jnp.max(jnp.abs(ref)))
    max_err = float(jnp.max(jnp.abs(out - ref)))
    # bf16 MXU operands (f32 accumulation): allow a few percent of the
    # output dynamic range; real wiring bugs produce O(max|ref|) errors.
    assert max_err <= 4e-2 * scale + 1e-2, (max_err, scale)

    print("KERNEL_OK")
</pallas_src>

<mosaic_0001>
module attributes {stable_mosaic.version = 11 : i64} {
  func.func @_encoder_kernel(%arg0: memref<2x2x16x16xf32, #tpu.memory_space<vmem>>, %arg1: memref<320x16xbf16, #tpu.memory_space<vmem>>, %arg2: memref<3392x128xbf16, #tpu.memory_space<vmem>>, %arg3: memref<72x128xf32, #tpu.memory_space<vmem>>, %arg4: memref<4x128xf32, #tpu.memory_space<vmem>>) attributes {dimension_semantics = [], scalar_prefetch = 0 : i64, scratch_operands = 0 : i64, tpu.core_type = #tpu.core_type<tc>} {
    %c0 = arith.constant 0 : index
    %c0_0 = arith.constant 0 : index
    %c0_1 = arith.constant 0 : index
    %c0_2 = arith.constant 0 : index
    %0 = vector.load %arg0[%c0, %c0_0, %c0_1, %c0_2] : memref<2x2x16x16xf32, #tpu.memory_space<vmem>>, vector<1x1x16x16xf32>
    %1 = vector.shape_cast %0 : vector<1x1x16x16xf32> to vector<16x16xf32>
    %c1 = arith.constant 1 : index
    %c0_3 = arith.constant 0 : index
    %c0_4 = arith.constant 0 : index
    %c0_5 = arith.constant 0 : index
    %2 = vector.load %arg0[%c1, %c0_3, %c0_4, %c0_5] : memref<2x2x16x16xf32, #tpu.memory_space<vmem>>, vector<1x1x16x16xf32>
    %3 = vector.shape_cast %2 : vector<1x1x16x16xf32> to vector<16x16xf32>
    %4 = tpu.concatenate %1, %3 in 1 : vector<16x16xf32>, vector<16x16xf32> -> vector<16x32xf32>
    %c0_6 = arith.constant 0 : index
    %c1_7 = arith.constant 1 : index
    %c0_8 = arith.constant 0 : index
    %c0_9 = arith.constant 0 : index
    %5 = vector.load %arg0[%c0_6, %c1_7, %c0_8, %c0_9] : memref<2x2x16x16xf32, #tpu.memory_space<vmem>>, vector<1x1x16x16xf32>
    %6 = vector.shape_cast %5 : vector<1x1x16x16xf32> to vector<16x16xf32>
    %c1_10 = arith.constant 1 : index
    %c1_11 = arith.constant 1 : index
    %c0_12 = arith.constant 0 : index
    %c0_13 = arith.constant 0 : index
    %7 = vector.load %arg0[%c1_10, %c1_11, %c0_12, %c0_13] : memref<2x2x16x16xf32, #tpu.memory_space<vmem>>, vector<1x1x16x16xf32>
    %8 = vector.shape_cast %7 : vector<1x1x16x16xf32> to vector<16x16xf32>
    %9 = tpu.concatenate %6, %8 in 1 : vector<16x16xf32>, vector<16x16xf32> -> vector<16x32xf32>
    %c0_14 = arith.constant 0 : index
    %c0_15 = arith.constant 0 : index
    %10 = vector.load %arg1[%c0_14, %c0_15] : memref<320x16xbf16, #tpu.memory_space<vmem>>, vector<48x16xbf16>
    %11 = arith.truncf %4 : vector<16x32xf32> to vector<16x32xbf16>
    %cst = arith.constant dense<0.000000e+00> : vector<48x32xf32>
    %12 = tpu.matmul %10, %11, %cst {dimension_numbers = #tpu.dot_dimension_numbers<[1], [0], [0], [1], [0, 0, 1, 1], [], []>} : vector<48x16xbf16>, vector<16x32xbf16>, vector<48x32xf32> -> vector<48x32xf32>
    %13 = vector.extract_strided_slice %12 {offsets = [0, 0], sizes = [16, 32], strides = [1, 1]} : vector<48x32xf32> to vector<16x32xf32>
    %14 = arith.truncf %13 : vector<16x32xf32> to vector<16x32xbf16>
    %c0_16 = arith.constant 0 : index
    %c0_17 = arith.constant 0 : index
    %15 = vector.load %arg2[%c0_16, %c0_17] : memref<3392x128xbf16, #tpu.memory_space<vmem>>, vector<32x128xbf16>
    %cst_18 = arith.constant dense<0.000000e+00> : vector<16x128xf32>
    %16 = tpu.matmul %14, %15, %cst_18 {dimension_numbers = #tpu.dot_dimension_numbers<[1], [0], [0], [1], [0, 0, 1, 1], [], []>} : vector<16x32xbf16>, vector<32x128xbf16>, vector<16x128xf32> -> vector<16x128xf32>
    %17 = vector.extract_strided_slice %12 {offsets = [16, 0], sizes = [16, 32], strides = [1, 1]} : vector<48x32xf32> to vector<16x32xf32>
    %18 = arith.truncf %17 : vector<16x32xf32> to vector<16x32xbf16>
    %c32 = arith.constant 32 : index
    %c0_19 = arith.constant 0 : index
    %19 = vector.load %arg2[%c32, %c0_19] : memref<3392x128xbf16, #tpu.memory_space<vmem>>, vector<32x128xbf16>
    %cst_20 = arith.constant dense<0.000000e+00> : vector<16x128xf32>
    %20 = tpu.matmul %18, %19, %cst_20 {dimension_numbers = #tpu.dot_dimension_numbers<[1], [0], [0], [1], [0, 0, 1, 1], [], []>} : vector<16x32xbf16>, vector<32x128xbf16>, vector<16x128xf32> -> vector<16x128xf32>
    %21 = arith.addf %16, %20 : vector<16x128xf32>
    %22 = vector.extract_strided_slice %12 {offsets = [32, 0], sizes = [16, 32], strides = [1, 1]} : vector<48x32xf32> to vector<16x32xf32>
    %23 = arith.truncf %22 : vector<16x32xf32> to vector<16x32xbf16>
    %c64 = arith.constant 64 : index
    %c0_21 = arith.constant 0 : index
    %24 = vector.load %arg2[%c64, %c0_21] : memref<3392x128xbf16, #tpu.memory_space<vmem>>, vector<32x128xbf16>
    %cst_22 = arith.constant dense<0.000000e+00> : vector<16x128xf32>
    %25 = tpu.matmul %23, %24, %cst_22 {dimension_numbers = #tpu.dot_dimension_numbers<[1], [0], [0], [1], [0, 0, 1, 1], [], []>} : vector<16x32xbf16>, vector<32x128xbf16>, vector<16x128xf32> -> vector<16x128xf32>
    %26 = arith.addf %21, %25 : vector<16x128xf32>
    %c0_23 = arith.constant 0 : index
    %c0_24 = arith.constant 0 : index
    %27 = vector.load %arg3[%c0_23, %c0_24] : memref<72x128xf32, #tpu.memory_space<vmem>>, vector<1x128xf32>
    %28 = vector.broadcast %27 : vector<1x128xf32> to vector<16x128xf32>
    %29 = arith.addf %26, %28 : vector<16x128xf32>
    %c48 = arith.constant 48 : index
    %c0_25 = arith.constant 0 : index
    %30 = vector.load %arg1[%c48, %c0_25] : memref<320x16xbf16, #tpu.memory_space<vmem>>, vector<32x16xbf16>
    %31 = arith.truncf %29 : vector<16x128xf32> to vector<16x128xbf16>
    %cst_26 = arith.constant dense<0.000000e+00> : vector<32x128xf32>
    %32 = tpu.matmul %30, %31, %cst_26 {dimension_numbers = #tpu.dot_dimension_numbers<[1], [0], [0], [1], [0, 0, 1, 1], [], []>} : vector<32x16xbf16>, vector<16x128xbf16>, vector<32x128xf32> -> vector<32x128xf32>
    %33 = vector.extract_strided_slice %32 {offsets = [0, 0], sizes = [8, 128], strides = [1, 1]} : vector<32x128xf32> to vector<8x128xf32>
    %34 = arith.truncf %33 : vector<8x128xf32> to vector<8x128xbf16>
    %c96 = arith.constant 96 : index
    %c0_27 = arith.constant 0 : index
    %35 = vector.load %arg2[%c96, %c0_27] : memref<3392x128xbf16, #tpu.memory_space<vmem>>, vector<128x128xbf16>
    %cst_28 = arith.constant dense<0.000000e+00> : vector<8x128xf32>
    %36 = tpu.matmul %34, %35, %cst_28 {dimension_numbers = #tpu.dot_dimension_numbers<[1], [0], [0], [1], [0, 0, 1, 1], [], []>} : vector<8x128xbf16>, vector<128x128xbf16>, vector<8x128xf32> -> vector<8x128xf32>
    %37 = vector.extract_strided_slice %32 {offsets = [8, 0], sizes = [8, 128], strides = [1, 1]} : vector<32x128xf32> to vector<8x128xf32>
    %38 = arith.truncf %37 : vector<8x128xf32> to vector<8x128xbf16>
    %c224 = arith.constant 224 : index
    %c0_29 = arith.constant 0 : index
    %39 = vector.load %arg2[%c224, %c0_29] : memref<3392x128xbf16, #tpu.memory_space<vmem>>, vector<128x128xbf16>
    %cst_30 = arith.constant dense<0.000000e+00> : vector<8x128xf32>
    %40 = tpu.matmul %38, %39, %cst_30 {dimension_numbers = #tpu.dot_dimension_numbers<[1], [0], [0], [1], [0, 0, 1, 1], [], []>} : vector<8x128xbf16>, vector<128x128xbf16>, vector<8x128xf32> -> vector<8x128xf32>
    %41 = arith.addf %36, %40 : vector<8x128xf32>
    %42 = vector.extract_strided_slice %32 {offsets = [16, 0], sizes = [8, 128], strides = [1, 1]} : vector<32x128xf32> to vector<8x128xf32>
    %43 = arith.truncf %42 : vector<8x128xf32> to vector<8x128xbf16>
    %c352 = arith.constant 352 : index
    %c0_31 = arith.constant 0 : index
    %44 = vector.load %arg2[%c352, %c0_31] : memref<3392x128xbf16, #tpu.memory_space<vmem>>, vector<128x128xbf16>
    %cst_32 = arith.constant dense<0.000000e+00> : vector<8x128xf32>
    %45 = tpu.matmul %43, %44, %cst_32 {dimension_numbers = #tpu.dot_dimension_numbers<[1], [0], [0], [1], [0, 0, 1, 1], [], []>} : vector<8x128xbf16>, vector<128x128xbf16>, vector<8x128xf32> -> vector<8x128xf32>
    %46 = arith.addf %41, %45 : vector<8x128xf32>
    %47 = vector.extract_strided_slice %32 {offsets = [24, 0], sizes = [8, 128], strides = [1, 1]} : vector<32x128xf32> to vector<8x128xf32>
    %48 = arith.truncf %47 : vector<8x128xf32> to vector<8x128xbf16>
    %c480 = arith.constant 480 : index
    %c0_33 = arith.constant 0 : index
    %49 = vector.load %arg2[%c480, %c0_33] : memref<3392x128xbf16, #tpu.memory_space<vmem>>, vector<128x128xbf16>
    %cst_34 = arith.constant dense<0.000000e+00> : vector<8x128xf32>
    %50 = tpu.matmul %48, %49, %cst_34 {dimension_numbers = #tpu.dot_dimension_numbers<[1], [0], [0], [1], [0, 0, 1, 1], [], []>} : vector<8x128xbf16>, vector<128x128xbf16>, vector<8x128xf32> -> vector<8x128xf32>
    %51 = arith.addf %46, %50 : vector<8x128xf32>
    %c8 = arith.constant 8 : index
    %c0_35 = arith.constant 0 : index
    %52 = vector.load %arg3[%c8, %c0_35] : memref<72x128xf32, #tpu.memory_space<vmem>>, vector<1x128xf32>
    %53 = vector.broadcast %52 : vector<1x128xf32> to vector<8x128xf32>
    %54 = arith.addf %51, %53 : vector<8x128xf32>
    %c80 = arith.constant 80 : index
    %c0_36 = arith.constant 0 : index
    %55 = vector.load %arg1[%c80, %c0_36] : memref<320x16xbf16, #tpu.memory_space<vmem>>, vector<24x8xbf16>
    %56 = arith.truncf %54 : vector<8x128xf32> to vector<8x128xbf16>
    %cst_37 = arith.constant dense<0.000000e+00> : vector<24x128xf32>
    %57 = tpu.matmul %55, %56, %cst_37 {dimension_numbers = #tpu.dot_dimension_numbers<[1], [0], [0], [1], [0, 0, 1, 1], [], []>} : vector<24x8xbf16>, vector<8x128xbf16>, vector<24x128xf32> -> vector<24x128xf32>
    %58 = vector.extract_strided_slice %57 {offsets = [0, 0], sizes = [8, 128], strides = [1, 1]} : vector<24x128xf32> to vector<8x128xf32>
    %59 = arith.truncf %58 : vector<8x128xf32> to vector<8x128xbf16>
    %c608 = arith.constant 608 : index
    %c0_38 = arith.constant 0 : index
    %60 = vector.load %arg2[%c608, %c0_38] : memref<3392x128xbf16, #tpu.memory_space<vmem>>, vector<128x128xbf16>
    %cst_39 = arith.constant dense<0.000000e+00> : vector<8x128xf32>
    %61 = tpu.matmul %59, %60, %cst_39 {dimension_numbers = #tpu.dot_dimension_numbers<[1], [0], [0], [1], [0, 0, 1, 1], [], []>} : vector<8x128xbf16>, vector<128x128xbf16>, vector<8x128xf32> -> vector<8x128xf32>
    %62 = vector.extract_strided_slice %57 {offsets = [8, 0], sizes = [8, 128], strides = [1, 1]} : vector<24x128xf32> to vector<8x128xf32>
    %63 = arith.truncf %62 : vector<8x128xf32> to vector<8x128xbf16>
    %c736 = arith.constant 736 : index
    %c0_40 = arith.constant 0 : index
    %64 = vector.load %arg2[%c736, %c0_40] : memref<3392x128xbf16, #tpu.memory_space<vmem>>, vector<128x128xbf16>
    %cst_41 = arith.constant dense<0.000000e+00> : vector<8x128xf32>
    %65 = tpu.matmul %63, %64, %cst_41 {dimension_numbers = #tpu.dot_dimension_numbers<[1], [0], [0], [1], [0, 0, 1, 1], [], []>} : vector<8x128xbf16>, vector<128x128xbf16>, vector<8x128xf32> -> vector<8x128xf32>
    %66 = arith.addf %61, %65 : vector<8x128xf32>
    %67 = vector.extract_strided_slice %57 {offsets = [16, 0], sizes = [8, 128], strides = [1, 1]} : vector<24x128xf32> to vector<8x128xf32>
    %68 = arith.truncf %67 : vector<8x128xf32> to vector<8x128xbf16>
    %c864 = arith.constant 864 : index
    %c0_42 = arith.constant 0 : index
    %69 = vector.load %arg2[%c864, %c0_42] : memref<3392x128xbf16, #tpu.memory_space<vmem>>, vector<128x128xbf16>
    %cst_43 = arith.constant dense<0.000000e+00> : vector<8x128xf32>
    %70 = tpu.matmul %68, %69, %cst_43 {dimension_numbers = #tpu.dot_dimension_numbers<[1], [0], [0], [1], [0, 0, 1, 1], [], []>} : vector<8x128xbf16>, vector<128x128xbf16>, vector<8x128xf32> -> vector<8x128xf32>
    %71 = arith.addf %66, %70 : vector<8x128xf32>
    %c16 = arith.constant 16 : index
    %c0_44 = arith.constant 0 : index
    %72 = vector.load %arg3[%c16, %c0_44] : memref<72x128xf32, #tpu.memory_space<vmem>>, vector<1x128xf32>
    %73 = vector.broadcast %72 : vector<1x128xf32> to vector<8x128xf32>
    %74 = arith.addf %71, %73 : vector<8x128xf32>
    %c112 = arith.constant 112 : index
    %c0_45 = arith.constant 0 : index
    %75 = vector.load %arg1[%c112, %c0_45] : memref<320x16xbf16, #tpu.memory_space<vmem>>, vector<32x8xbf16>
    %76 = arith.truncf %74 : vector<8x128xf32> to vector<8x128xbf16>
    %cst_46 = arith.constant dense<0.000000e+00> : vector<32x128xf32>
    %77 = tpu.matmul %75, %76, %cst_46 {dimension_numbers = #tpu.dot_dimension_numbers<[1], [0], [0], [1], [0, 0, 1, 1], [], []>} : vector<32x8xbf16>, vector<8x128xbf16>, vector<32x128xf32> -> vector<32x128xf32>
    %78 = vector.extract_strided_slice %77 {offsets = [0, 0], sizes = [8, 128], strides = [1, 1]} : vector<32x128xf32> to vector<8x128xf32>
    %79 = arith.truncf %78 : vector<8x128xf32> to vector<8x128xbf16>
    %c992 = arith.constant 992 : index
    %c0_47 = arith.constant 0 : index
    %80 = vector.load %arg2[%c992, %c0_47] : memref<3392x128xbf16, #tpu.memory_space<vmem>>, vector<128x128xbf16>
    %cst_48 = arith.constant dense<0.000000e+00> : vector<8x128xf32>
    %81 = tpu.matmul %79, %80, %cst_48 {dimension_numbers = #tpu.dot_dimension_numbers<[1], [0], [0], [1], [0, 0, 1, 1], [], []>} : vector<8x128xbf16>, vector<128x128xbf16>, vector<8x128xf32> -> vector<8x128xf32>
    %82 = vector.extract_strided_slice %77 {offsets = [8, 0], sizes = [8, 128], strides = [1, 1]} : vector<32x128xf32> to vector<8x128xf32>
    %83 = arith.truncf %82 : vector<8x128xf32> to vector<8x128xbf16>
    %c1120 = arith.constant 1120 : index
    %c0_49 = arith.constant 0 : index
    %84 = vector.load %arg2[%c1120, %c0_49] : memref<3392x128xbf16, #tpu.memory_space<vmem>>, vector<128x128xbf16>
    %cst_50 = arith.constant dense<0.000000e+00> : vector<8x128xf32>
    %85 = tpu.matmul %83, %84, %cst_50 {dimension_numbers = #tpu.dot_dimension_numbers<[1], [0], [0], [1], [0, 0, 1, 1], [], []>} : vector<8x128xbf16>, vector<128x128xbf16>, vector<8x128xf32> -> vector<8x128xf32>
    %86 = arith.addf %81, %85 : vector<8x128xf32>
    %87 = vector.extract_strided_slice %77 {offsets = [16, 0], sizes = [8, 128], strides = [1, 1]} : vector<32x128xf32> to vector<8x128xf32>
    %88 = arith.truncf %87 : vector<8x128xf32> to vector<8x128xbf16>
    %c1248 = arith.constant 1248 : index
    %c0_51 = arith.constant 0 : index
    %89 = vector.load %arg2[%c1248, %c0_51] : memref<3392x128xbf16, #tpu.memory_space<vmem>>, vector<128x128xbf16>
    %cst_52 = arith.constant dense<0.000000e+00> : vector<8x128xf32>
    %90 = tpu.matmul %88, %89, %cst_52 {dimension_numbers = #tpu.dot_dimension_numbers<[1], [0], [0], [1], [0, 0, 1, 1], [], []>} : vector<8x128xbf16>, vector<128x128xbf16>, vector<8x128xf32> -> vector<8x128xf32>
    %91 = arith.addf %86, %90 : vector<8x128xf32>
    %92 = vector.extract_strided_slice %77 {offsets = [24, 0], sizes = [8, 128], strides = [1, 1]} : vector<32x128xf32> to vector<8x128xf32>
    %93 = arith.truncf %92 : vector<8x128xf32> to vector<8x128xbf16>
    %c1376 = arith.constant 1376 : index
    %c0_53 = arith.constant 0 : index
    %94 = vector.load %arg2[%c1376, %c0_53] : memref<3392x128xbf16, #tpu.memory_space<vmem>>, vector<128x128xbf16>
    %cst_54 = arith.constant dense<0.000000e+00> : vector<8x128xf32>
    %95 = tpu.matmul %93, %94, %cst_54 {dimension_numbers = #tpu.dot_dimension_numbers<[1], [0], [0], [1], [0, 0, 1, 1], [], []>} : vector<8x128xbf16>, vector<128x128xbf16>, vector<8x128xf32> -> vector<8x128xf32>
    %96 = arith.addf %91, %95 : vector<8x128xf32>
    %c24 = arith.constant 24 : index
    %c0_55 = arith.constant 0 : index
    %97 = vector.load %arg3[%c24, %c0_55] : memref<72x128xf32, #tpu.memory_space<vmem>>, vector<1x128xf32>
    %98 = vector.extract_strided_slice %96 {offsets = [0, 0], sizes = [4, 128], strides = [1, 1]} : vector<8x128xf32> to vector<4x128xf32>
    %99 = vector.broadcast %97 : vector<1x128xf32> to vector<4x128xf32>
    %100 = arith.addf %98, %99 : vector<4x128xf32>
    %c144 = arith.constant 144 : index
    %c0_56 = arith.constant 0 : index
    %101 = vector.load %arg1[%c144, %c0_56] : memref<320x16xbf16, #tpu.memory_space<vmem>>, vector<48x16xbf16>
    %102 = arith.truncf %9 : vector<16x32xf32> to vector<16x32xbf16>
    %cst_57 = arith.constant dense<0.000000e+00> : vector<48x32xf32>
    %103 = tpu.matmul %101, %102, %cst_57 {dimension_numbers = #tpu.dot_dimension_numbers<[1], [0], [0], [1], [0, 0, 1, 1], [], []>} : vector<48x16xbf16>, vector<16x32xbf16>, vector<48x32xf32> -> vector<48x32xf32>
    %104 = vector.extract_strided_slice %103 {offsets = [0, 0], sizes = [16, 32], strides = [1, 1]} : vector<48x32xf32> to vector<16x32xf32>
    %105 = arith.truncf %104 : vector<16x32xf32> to vector<16x32xbf16>
    %c1504 = arith.constant 1504 : index
    %c0_58 = arith.constant 0 : index
    %106 = vector.load %arg2[%c1504, %c0_58] : memref<3392x128xbf16, #tpu.memory_space<vmem>>, vector<32x128xbf16>
    %cst_59 = arith.constant dense<0.000000e+00> : vector<16x128xf32>
    %107 = tpu.matmul %105, %106, %cst_59 {dimension_numbers = #tpu.dot_dimension_numbers<[1], [0], [0], [1], [0, 0, 1, 1], [], []>} : vector<16x32xbf16>, vector<32x128xbf16>, vector<16x128xf32> -> vector<16x128xf32>
    %108 = vector.extract_strided_slice %103 {offsets = [16, 0], sizes = [16, 32], strides = [1, 1]} : vector<48x32xf32> to vector<16x32xf32>
    %109 = arith.truncf %108 : vector<16x32xf32> to vector<16x32xbf16>
    %c1536 = arith.constant 1536 : index
    %c0_60 = arith.constant 0 : index
    %110 = vector.load %arg2[%c1536, %c0_60] : memref<3392x128xbf16, #tpu.memory_space<vmem>>, vector<32x128xbf16>
    %cst_61 = arith.constant dense<0.000000e+00> : vector<16x128xf32>
    %111 = tpu.matmul %109, %110, %cst_61 {dimension_numbers = #tpu.dot_dimension_numbers<[1], [0], [0], [1], [0, 0, 1, 1], [], []>} : vector<16x32xbf16>, vector<32x128xbf16>, vector<16x128xf32> -> vector<16x128xf32>
    %112 = arith.addf %107, %111 : vector<16x128xf32>
    %113 = vector.extract_strided_slice %103 {offsets = [32, 0], sizes = [16, 32], strides = [1, 1]} : vector<48x32xf32> to vector<16x32xf32>
    %114 = arith.truncf %113 : vector<16x32xf32> to vector<16x32xbf16>
    %c1568 = arith.constant 1568 : index
    %c0_62 = arith.constant 0 : index
    %115 = vector.load %arg2[%c1568, %c0_62] : memref<3392x128xbf16, #tpu.memory_space<vmem>>, vector<32x128xbf16>
    %cst_63 = arith.constant dense<0.000000e+00> : vector<16x128xf32>
    %116 = tpu.matmul %114, %115, %cst_63 {dimension_numbers = #tpu.dot_dimension_numbers<[1], [0], [0], [1], [0, 0, 1, 1], [], []>} : vector<16x32xbf16>, vector<32x128xbf16>, vector<16x128xf32> -> vector<16x128xf32>
    %117 = arith.addf %112, %116 : vector<16x128xf32>
    %c32_64 = arith.constant 32 : index
    %c0_65 = arith.constant 0 : index
    %118 = vector.load %arg3[%c32_64, %c0_65] : memref<72x128xf32, #tpu.memory_space<vmem>>, vector<1x128xf32>
    %119 = vector.broadcast %118 : vector<1x128xf32> to vector<16x128xf32>
    %120 = arith.addf %117, %119 : vector<16x128xf32>
    %c192 = arith.constant 192 : index
    %c0_66 = arith.constant 0 : index
    %121 = vector.load %arg1[%c192, %c0_66] : memref<320x16xbf16, #tpu.memory_space<vmem>>, vector<32x16xbf16>
    %122 = arith.truncf %120 : vector<16x128xf32> to vector<16x128xbf16>
    %cst_67 = arith.constant dense<0.000000e+00> : vector<32x128xf32>
    %123 = tpu.matmul %121, %122, %cst_67 {dimension_numbers = #tpu.dot_dimension_numbers<[1], [0], [0], [1], [0, 0, 1, 1], [], []>} : vector<32x16xbf16>, vector<16x128xbf16>, vector<32x128xf32> -> vector<32x128xf32>
    %124 = vector.extract_strided_slice %123 {offsets = [0, 0], sizes = [8, 128], strides = [1, 1]} : vector<32x128xf32> to vector<8x128xf32>
    %125 = arith.truncf %124 : vector<8x128xf32> to vector<8x128xbf16>
    %c1600 = arith.constant 1600 : index
    %c0_68 = arith.constant 0 : index
    %126 = vector.load %arg2[%c1600, %c0_68] : memref<3392x128xbf16, #tpu.memory_space<vmem>>, vector<128x128xbf16>
    %cst_69 = arith.constant dense<0.000000e+00> : vector<8x128xf32>
    %127 = tpu.matmul %125, %126, %cst_69 {dimension_numbers = #tpu.dot_dimension_numbers<[1], [0], [0], [1], [0, 0, 1, 1], [], []>} : vector<8x128xbf16>, vector<128x128xbf16>, vector<8x128xf32> -> vector<8x128xf32>
    %128 = vector.extract_strided_slice %123 {offsets = [8, 0], sizes = [8, 128], strides = [1, 1]} : vector<32x128xf32> to vector<8x128xf32>
    %129 = arith.truncf %128 : vector<8x128xf32> to vector<8x128xbf16>
    %c1728 = arith.constant 1728 : index
    %c0_70 = arith.constant 0 : index
    %130 = vector.load %arg2[%c1728, %c0_70] : memref<3392x128xbf16, #tpu.memory_space<vmem>>, vector<128x128xbf16>
    %cst_71 = arith.constant dense<0.000000e+00> : vector<8x128xf32>
    %131 = tpu.matmul %129, %130, %cst_71 {dimension_numbers = #tpu.dot_dimension_numbers<[1], [0], [0], [1], [0, 0, 1, 1], [], []>} : vector<8x128xbf16>, vector<128x128xbf16>, vector<8x128xf32> -> vector<8x128xf32>
    %132 = arith.addf %127, %131 : vector<8x128xf32>
    %133 = vector.extract_strided_slice %123 {offsets = [16, 0], sizes = [8, 128], strides = [1, 1]} : vector<32x128xf32> to vector<8x128xf32>
    %134 = arith.truncf %133 : vector<8x128xf32> to vector<8x128xbf16>
    %c1856 = arith.constant 1856 : index
    %c0_72 = arith.constant 0 : index
    %135 = vector.load %arg2[%c1856, %c0_72] : memref<3392x128xbf16, #tpu.memory_space<vmem>>, vector<128x128xbf16>
    %cst_73 = arith.constant dense<0.000000e+00> : vector<8x128xf32>
    %136 = tpu.matmul %134, %135, %cst_73 {dimension_numbers = #tpu.dot_dimension_numbers<[1], [0], [0], [1], [0, 0, 1, 1], [], []>} : vector<8x128xbf16>, vector<128x128xbf16>, vector<8x128xf32> -> vector<8x128xf32>
    %137 = arith.addf %132, %136 : vector<8x128xf32>
    %138 = vector.extract_strided_slice %123 {offsets = [24, 0], sizes = [8, 128], strides = [1, 1]} : vector<32x128xf32> to vector<8x128xf32>
    %139 = arith.truncf %138 : vector<8x128xf32> to vector<8x128xbf16>
    %c1984 = arith.constant 1984 : index
    %c0_74 = arith.constant 0 : index
    %140 = vector.load %arg2[%c1984, %c0_74] : memref<3392x128xbf16, #tpu.memory_space<vmem>>, vector<128x128xbf16>
    %cst_75 = arith.constant dense<0.000000e+00> : vector<8x128xf32>
    %141 = tpu.matmul %139, %140, %cst_75 {dimension_numbers = #tpu.dot_dimension_numbers<[1], [0], [0], [1], [0, 0, 1, 1], [], []>} : vector<8x128xbf16>, vector<128x128xbf16>, vector<8x128xf32> -> vector<8x128xf32>
    %142 = arith.addf %137, %141 : vector<8x128xf32>
    %c40 = arith.constant 40 : index
    %c0_76 = arith.constant 0 : index
    %143 = vector.load %arg3[%c40, %c0_76] : memref<72x128xf32, #tpu.memory_space<vmem>>, vector<1x128xf32>
    %144 = vector.broadcast %143 : vector<1x128xf32> to vector<8x128xf32>
    %145 = arith.addf %142, %144 : vector<8x128xf32>
    %146 = arith.addf %145, %54 : vector<8x128xf32>
    %c224_77 = arith.constant 224 : index
    %c0_78 = arith.constant 0 : index
    %147 = vector.load %arg1[%c224_77, %c0_78] : memref<320x16xbf16, #tpu.memory_space<vmem>>, vector<24x8xbf16>
    %148 = arith.truncf %146 : vector<8x128xf32> to vector<8x128xbf16>
    %cst_79 = arith.constant dense<0.000000e+00> : vector<24x128xf32>
    %149 = tpu.matmul %147, %148, %cst_79 {dimension_numbers = #tpu.dot_dimension_numbers<[1], [0], [0], [1], [0, 0, 1, 1], [], []>} : vector<24x8xbf16>, vector<8x128xbf16>, vector<24x128xf32> -> vector<24x128xf32>
    %150 = vector.extract_strided_slice %149 {offsets = [0, 0], sizes = [8, 128], strides = [1, 1]} : vector<24x128xf32> to vector<8x128xf32>
    %151 = arith.truncf %150 : vector<8x128xf32> to vector<8x128xbf16>
    %c2112 = arith.constant 2112 : index
    %c0_80 = arith.constant 0 : index
    %152 = vector.load %arg2[%c2112, %c0_80] : memref<3392x128xbf16, #tpu.memory_space<vmem>>, vector<128x128xbf16>
    %cst_81 = arith.constant dense<0.000000e+00> : vector<8x128xf32>
    %153 = tpu.matmul %151, %152, %cst_81 {dimension_numbers = #tpu.dot_dimension_numbers<[1], [0], [0], [1], [0, 0, 1, 1], [], []>} : vector<8x128xbf16>, vector<128x128xbf16>, vector<8x128xf32> -> vector<8x128xf32>
    %154 = vector.extract_strided_slice %149 {offsets = [8, 0], sizes = [8, 128], strides = [1, 1]} : vector<24x128xf32> to vector<8x128xf32>
    %155 = arith.truncf %154 : vector<8x128xf32> to vector<8x128xbf16>
    %c2240 = arith.constant 2240 : index
    %c0_82 = arith.constant 0 : index
    %156 = vector.load %arg2[%c2240, %c0_82] : memref<3392x128xbf16, #tpu.memory_space<vmem>>, vector<128x128xbf16>
    %cst_83 = arith.constant dense<0.000000e+00> : vector<8x128xf32>
    %157 = tpu.matmul %155, %156, %cst_83 {dimension_numbers = #tpu.dot_dimension_numbers<[1], [0], [0], [1], [0, 0, 1, 1], [], []>} : vector<8x128xbf16>, vector<128x128xbf16>, vector<8x128xf32> -> vector<8x128xf32>
    %158 = arith.addf %153, %157 : vector<8x128xf32>
    %159 = vector.extract_strided_slice %149 {offsets = [16, 0], sizes = [8, 128], strides = [1, 1]} : vector<24x128xf32> to vector<8x128xf32>
    %160 = arith.truncf %159 : vector<8x128xf32> to vector<8x128xbf16>
    %c2368 = arith.constant 2368 : index
    %c0_84 = arith.constant 0 : index
    %161 = vector.load %arg2[%c2368, %c0_84] : memref<3392x128xbf16, #tpu.memory_space<vmem>>, vector<128x128xbf16>
    %cst_85 = arith.constant dense<0.000000e+00> : vector<8x128xf32>
    %162 = tpu.matmul %160, %161, %cst_85 {dimension_numbers = #tpu.dot_dimension_numbers<[1], [0], [0], [1], [0, 0, 1, 1], [], []>} : vector<8x128xbf16>, vector<128x128xbf16>, vector<8x128xf32> -> vector<8x128xf32>
    %163 = arith.addf %158, %162 : vector<8x128xf32>
    %c48_86 = arith.constant 48 : index
    %c0_87 = arith.constant 0 : index
    %164 = vector.load %arg3[%c48_86, %c0_87] : memref<72x128xf32, #tpu.memory_space<vmem>>, vector<1x128xf32>
    %165 = vector.broadcast %164 : vector<1x128xf32> to vector<8x128xf32>
    %166 = arith.addf %163, %165 : vector<8x128xf32>
    %c256 = arith.constant 256 : index
    %c0_88 = arith.constant 0 : index
    %167 = vector.load %arg1[%c256, %c0_88] : memref<320x16xbf16, #tpu.memory_space<vmem>>, vector<32x8xbf16>
    %168 = arith.truncf %166 : vector<8x128xf32> to vector<8x128xbf16>
    %cst_89 = arith.constant dense<0.000000e+00> : vector<32x128xf32>
    %169 = tpu.matmul %167, %168, %cst_89 {dimension_numbers = #tpu.dot_dimension_numbers<[1], [0], [0], [1], [0, 0, 1, 1], [], []>} : vector<32x8xbf16>, vector<8x128xbf16>, vector<32x128xf32> -> vector<32x128xf32>
    %170 = vector.extract_strided_slice %169 {offsets = [0, 0], sizes = [8, 128], strides = [1, 1]} : vector<32x128xf32> to vector<8x128xf32>
    %171 = arith.truncf %170 : vector<8x128xf32> to vector<8x128xbf16>
    %c2496 = arith.constant 2496 : index
    %c0_90 = arith.constant 0 : index
    %172 = vector.load %arg2[%c2496, %c0_90] : memref<3392x128xbf16, #tpu.memory_space<vmem>>, vector<128x128xbf16>
    %cst_91 = arith.constant dense<0.000000e+00> : vector<8x128xf32>
    %173 = tpu.matmul %171, %172, %cst_91 {dimension_numbers = #tpu.dot_dimension_numbers<[1], [0], [0], [1], [0, 0, 1, 1], [], []>} : vector<8x128xbf16>, vector<128x128xbf16>, vector<8x128xf32> -> vector<8x128xf32>
    %174 = vector.extract_strided_slice %169 {offsets = [8, 0], sizes = [8, 128], strides = [1, 1]} : vector<32x128xf32> to vector<8x128xf32>
    %175 = arith.truncf %174 : vector<8x128xf32> to vector<8x128xbf16>
    %c2624 = arith.constant 2624 : index
    %c0_92 = arith.constant 0 : index
    %176 = vector.load %arg2[%c2624, %c0_92] : memref<3392x128xbf16, #tpu.memory_space<vmem>>, vector<128x128xbf16>
    %cst_93 = arith.constant dense<0.000000e+00> : vector<8x128xf32>
    %177 = tpu.matmul %175, %176, %cst_93 {dimension_numbers = #tpu.dot_dimension_numbers<[1], [0], [0], [1], [0, 0, 1, 1], [], []>} : vector<8x128xbf16>, vector<128x128xbf16>, vector<8x128xf32> -> vector<8x128xf32>
    %178 = arith.addf %173, %177 : vector<8x128xf32>
    %179 = vector.extract_strided_slice %169 {offsets = [16, 0], sizes = [8, 128], strides = [1, 1]} : vector<32x128xf32> to vector<8x128xf32>
    %180 = arith.truncf %179 : vector<8x128xf32> to vector<8x128xbf16>
    %c2752 = arith.constant 2752 : index
    %c0_94 = arith.constant 0 : index
    %181 = vector.load %arg2[%c2752, %c0_94] : memref<3392x128xbf16, #tpu.memory_space<vmem>>, vector<128x128xbf16>
    %cst_95 = arith.constant dense<0.000000e+00> : vector<8x128xf32>
    %182 = tpu.matmul %180, %181, %cst_95 {dimension_numbers = #tpu.dot_dimension_numbers<[1], [0], [0], [1], [0, 0, 1, 1], [], []>} : vector<8x128xbf16>, vector<128x128xbf16>, vector<8x128xf32> -> vector<8x128xf32>
    %183 = arith.addf %178, %182 : vector<8x128xf32>
    %184 = vector.extract_strided_slice %169 {offsets = [24, 0], sizes = [8, 128], strides = [1, 1]} : vector<32x128xf32> to vector<8x128xf32>
    %185 = arith.truncf %184 : vector<8x128xf32> to vector<8x128xbf16>
    %c2880 = arith.constant 2880 : index
    %c0_96 = arith.constant 0 : index
    %186 = vector.load %arg2[%c2880, %c0_96] : memref<3392x128xbf16, #tpu.memory_space<vmem>>, vector<128x128xbf16>
    %cst_97 = arith.constant dense<0.000000e+00> : vector<8x128xf32>
    %187 = tpu.matmul %185, %186, %cst_97 {dimension_numbers = #tpu.dot_dimension_numbers<[1], [0], [0], [1], [0, 0, 1, 1], [], []>} : vector<8x128xbf16>, vector<128x128xbf16>, vector<8x128xf32> -> vector<8x128xf32>
    %188 = arith.addf %183, %187 : vector<8x128xf32>
    %c56 = arith.constant 56 : index
    %c0_98 = arith.constant 0 : index
    %189 = vector.load %arg3[%c56, %c0_98] : memref<72x128xf32, #tpu.memory_space<vmem>>, vector<1x128xf32>
    %190 = vector.extract_strided_slice %188 {offsets = [0, 0], sizes = [4, 128], strides = [1, 1]} : vector<8x128xf32> to vector<4x128xf32>
    %191 = vector.broadcast %189 : vector<1x128xf32> to vector<4x128xf32>
    %192 = arith.addf %190, %191 : vector<4x128xf32>
    %193 = arith.addf %192, %100 : vector<4x128xf32>
    %c288 = arith.constant 288 : index
    %c0_99 = arith.constant 0 : index
    %194 = vector.load %arg1[%c288, %c0_99] : memref<320x16xbf16, #tpu.memory_space<vmem>>, vector<24x4xbf16>
    %195 = arith.truncf %193 : vector<4x128xf32> to vector<4x128xbf16>
    %cst_100 = arith.constant dense<0.000000e+00> : vector<24x128xf32>
    %196 = tpu.matmul %194, %195, %cst_100 {dimension_numbers = #tpu.dot_dimension_numbers<[1], [0], [0], [1], [0, 0, 1, 1], [], []>} : vector<24x4xbf16>, vector<4x128xbf16>, vector<24x128xf32> -> vector<24x128xf32>
    %197 = vector.extract_strided_slice %196 {offsets = [0, 0], sizes = [8, 128], strides = [1, 1]} : vector<24x128xf32> to vector<8x128xf32>
    %198 = arith.truncf %197 : vector<8x128xf32> to vector<8x128xbf16>
    %c3008 = arith.constant 3008 : index
    %c0_101 = arith.constant 0 : index
    %199 = vector.load %arg2[%c3008, %c0_101] : memref<3392x128xbf16, #tpu.memory_space<vmem>>, vector<128x128xbf16>
    %cst_102 = arith.constant dense<0.000000e+00> : vector<8x128xf32>
    %200 = tpu.matmul %198, %199, %cst_102 {dimension_numbers = #tpu.dot_dimension_numbers<[1], [0], [0], [1], [0, 0, 1, 1], [], []>} : vector<8x128xbf16>, vector<128x128xbf16>, vector<8x128xf32> -> vector<8x128xf32>
    %201 = vector.extract_strided_slice %196 {offsets = [8, 0], sizes = [8, 128], strides = [1, 1]} : vector<24x128xf32> to vector<8x128xf32>
    %202 = arith.truncf %201 : vector<8x128xf32> to vector<8x128xbf16>
    %c3136 = arith.constant 3136 : index
    %c0_103 = arith.constant 0 : index
    %203 = vector.load %arg2[%c3136, %c0_103] : memref<3392x128xbf16, #tpu.memory_space<vmem>>, vector<128x128xbf16>
    %cst_104 = arith.constant dense<0.000000e+00> : vector<8x128xf32>
    %204 = tpu.matmul %202, %203, %cst_104 {dimension_numbers = #tpu.dot_dimension_numbers<[1], [0], [0], [1], [0, 0, 1, 1], [], []>} : vector<8x128xbf16>, vector<128x128xbf16>, vector<8x128xf32> -> vector<8x128xf32>
    %205 = arith.addf %200, %204 : vector<8x128xf32>
    %206 = vector.extract_strided_slice %196 {offsets = [16, 0], sizes = [8, 128], strides = [1, 1]} : vector<24x128xf32> to vector<8x128xf32>
    %207 = arith.truncf %206 : vector<8x128xf32> to vector<8x128xbf16>
    %c3264 = arith.constant 3264 : index
    %c0_105 = arith.constant 0 : index
    %208 = vector.load %arg2[%c3264, %c0_105] : memref<3392x128xbf16, #tpu.memory_space<vmem>>, vector<128x128xbf16>
    %cst_106 = arith.constant dense<0.000000e+00> : vector<8x128xf32>
    %209 = tpu.matmul %207, %208, %cst_106 {dimension_numbers = #tpu.dot_dimension_numbers<[1], [0], [0], [1], [0, 0, 1, 1], [], []>} : vector<8x128xbf16>, vector<128x128xbf16>, vector<8x128xf32> -> vector<8x128xf32>
    %210 = arith.addf %205, %209 : vector<8x128xf32>
    %c64_107 = arith.constant 64 : index
    %c0_108 = arith.constant 0 : index
    %211 = vector.load %arg3[%c64_107, %c0_108] : memref<72x128xf32, #tpu.memory_space<vmem>>, vector<1x128xf32>
    %212 = vector.extract_strided_slice %210 {offsets = [0, 0], sizes = [4, 128], strides = [1, 1]} : vector<8x128xf32> to vector<4x128xf32>
    %213 = vector.broadcast %211 : vector<1x128xf32> to vector<4x128xf32>
    %214 = arith.addf %212, %213 : vector<4x128xf32>
    %c0_109 = arith.constant 0 : index
    %c0_110 = arith.constant 0 : index
    %215 = vector.load %arg4[%c0_109, %c0_110] : memref<4x128xf32, #tpu.memory_space<vmem>>, vector<4x128xf32>
    tpu.vector_store %arg4[%c0_109, %c0_110], %214 {strides = array<i32>} : memref<4x128xf32, #tpu.memory_space<vmem>>, vector<4x128xf32>,
    return
  }
}

</mosaic_0001>

<llo_original>
// kernel: encoder_forward.1
$region0: #{encoder_forward.1}
  #allocation0 [shape = 'u32[]', space=smem, size = 0x4, offset = 0x4, fixed_abs, tag = 'smem constant byte address 0x4 - core index']
  #allocation1 [shape = 'u32[72,128]{1,0:T(1,128)}', space=vmem, size = 0x9000, scoped, tag = 'internal scratch']
  %s0 = inlined_call_operand.vmem [shape: f32[2,2,16,16], index: 0, kind: input, shape index: {}]
  %s1 = inlined_call_operand.vmem [shape: bf16[320,16], index: 1, kind: input, shape index: {}]
  %s2 = inlined_call_operand.hbm [shape: bf16[3392,128], index: 2, kind: input, shape index: {}]
  %s3 = inlined_call_operand.vmem [shape: f32[72,128], index: 3, kind: input, shape index: {}]
  %s4 = inlined_call_operand.vmem [shape: f32[4,128], index: 4, kind: output, shape index: {}]
  %s5 = sld [smem:[#allocation0]]
  $region30: #{encoder_forward.1} parent=0
    _
  %s7 = ssub.s32 1, %s5
  %s8 = scalar_select 0, %s7, %s5
  $region1: #{encoder_forward.1} parent=0
    #allocation2 [shape = 'u8[868352]{0}', space=vmem, size = 0xd4000, scoped, tag = 'input window, operand 2, single buffered']
    #allocation3 [shape = 's32[1]{0}', space=sflag, size = 0x4, scoped, tag = 'scoped memory for encoder_forward.1']
    %9 = vsyncpa [#allocation3], 0
    // Predicated region
    $region2: #{encoder_forward.1} parent=1 // pred_check
      _
    $region3: #{encoder_forward.1} parent=1 // pred_check_branch
      %11 = sbr.rel (0) target = $region5
    $region4: #{encoder_forward.1} parent=1 // pred_region
      _
    $region5: #{encoder_forward.1} parent=1 // pred_fallthru
      _
    // Predicated region
    $region6: #{encoder_forward.1} parent=1 // pred_check
      _
    $region7: #{encoder_forward.1} parent=1 // pred_check_branch
      %13 = sbr.rel (0) target = $region9
    $region8: #{encoder_forward.1} parent=1 // pred_region
      _
    $region9: #{encoder_forward.1} parent=1 // pred_fallthru
      _
    // Predicated region
    $region10: #{encoder_forward.1} parent=1 // pred_check
      _
    $region11: #{encoder_forward.1} parent=1 // pred_check_branch
      %15 = sbr.rel (0) target = $region13
    $region12: #{encoder_forward.1} parent=1 // pred_region
      %17 = vsyncadd [#allocation3], 0
      %s18 = sshll.u32 %s2, 4
      %s19 = int_to_ptr.hbm [resolvable:$true] %s18
      %s20 = sshll.u32 [#allocation2], 4
      %s21 = int_to_ptr.vmem [resolvable:$true] %s20
      %26 = dma.hbm_to_vmem [thread:$0]  %s19, 27136, %s21, [#allocation3], 64, 64, 4
    $region13: #{encoder_forward.1} parent=1 // pred_fallthru
      _
    // Predicated region
    $region14: #{encoder_forward.1} parent=1 // pred_check
      _
    $region15: #{encoder_forward.1} parent=1 // pred_check_branch
      %28 = sbr.rel (0) target = $region17
    $region16: #{encoder_forward.1} parent=1 // pred_region
      _
    $region17: #{encoder_forward.1} parent=1 // pred_fallthru
      _
    // Predicated region
    $region18: #{encoder_forward.1} parent=1 // pred_check
      _
    $region19: #{encoder_forward.1} parent=1 // pred_check_branch
      %30 = sbr.rel (0) target = $region21
    $region20: #{encoder_forward.1} parent=1 // pred_region
      %32 = dma.done [#allocation3], 27136
    $region21: #{encoder_forward.1} parent=1 // pred_fallthru
      _
    %v34 = vld [vmem:[%s0] sm:$0xff]
    %v35 = vld [vmem:[%s0 + $0x8] sm:$0xff]
    %s36 = scalar_lea.vmem %s0, 32
    %v37 = vld [vmem:[%s36] sm:$0xff]
    %v38 = vld [vmem:[%s36 + $0x8] sm:$0xff]
    %41 = vrot.lane.b32.xlu0 %v37, 16
    %v42 = vpop.permute.xlu0 %41
    %43 = vrot.lane.b32.xlu0 %v38, 16
    %v44 = vpop.permute.xlu0 %43
    %vm47 = vcmask 130048
    %v48 = vsel %vm47, %v34, %v42
    %v49 = vsel %vm47, %v35, %v44
    %s50 = scalar_lea.vmem %s0, 16
    %v51 = vld [vmem:[%s50] sm:$0xff]
    %v52 = vld [vmem:[%s50 + $0x8] sm:$0xff]
    %s53 = scalar_lea.vmem %s0, 48
    %v54 = vld [vmem:[%s53] sm:$0xff]
    %v55 = vld [vmem:[%s53 + $0x8] sm:$0xff]
    %58 = vrot.lane.b32.xlu0 %v54, 16
    %v59 = vpop.permute.xlu0 %58
    %60 = vrot.lane.b32.xlu0 %v55, 16
    %v61 = vpop.permute.xlu0 %60
    %v64 = vsel %vm47, %v51, %v59
    %v65 = vsel %vm47, %v52, %v61
    %v66 = vld [vmem:[%s1] sm:$0xf]
    %v67 = vld [vmem:[%s1 + $0x4] sm:$0xf]
    %v68 = vld [vmem:[%s1 + $0x8] sm:$0xf]
    %v69 = vld [vmem:[%s1 + $0xc] sm:$0xf]
    %v70 = vld [vmem:[%s1 + $0x10] sm:$0xf]
    %v71 = vld [vmem:[%s1 + $0x14] sm:$0xf]
    %v72 = vpack.c.bf16 %v49, %v48
    %v79 = vunpack.c.l.b16 %v66
    %v80 = vunpack.c.l.b16 %v67
    %v81 = vunpack.c.l.b16 %v68
    %v82 = vunpack.c.l.b16 %v69
    %v83 = vunpack.c.l.b16 %v70
    %v84 = vunpack.c.l.b16 %v71
    %v85 = vpack.c.b16 %v80, %v79
    %v86 = vpack.c.b16 %v82, %v81
    %v87 = vpack.c.b16 %v84, %v83
    %v89 = vsel %vm47, %v85, 0
    %v92 = vsel %vm47, %v86, 0
    %v95 = vsel %vm47, %v87, 0
    %97 = vmatpush.bf16.msra.mxu0 0
    %98 = vmatpush.bf16.msra.mxu0 0
    %99 = vmatpush.bf16.msra.mxu0 0
    %100 = vmatpush.bf16.msra.mxu0 0
    %101 = vmatpush.bf16.msra.mxu0 0
    %102 = vmatpush.bf16.msra.mxu0 0
    %103 = vmatpush.bf16.msra.mxu0 0
    %104 = vmatpush.bf16.msra.mxu0 %v72
    %105 = vmatmul.bf16.gmra.mxu0 %v89
    %v106 = vpop.f32.mrf.mxu0
    %v107 = vadd.f32 0.0, %v106
    %v108 = vpop.f32.mrf.mxu0
    %v109 = vadd.f32 0.0, %v108
    %110 = vmatmul.bf16.gmra.mxu0 %v92
    %v111 = vpop.f32.mrf.mxu0
    %v112 = vadd.f32 0.0, %v111
    %v113 = vpop.f32.mrf.mxu0
    %v114 = vadd.f32 0.0, %v113
    %115 = vmatmul.bf16.gmra.mxu0 %v95
    %v116 = vpop.f32.mrf.mxu0
    %v117 = vadd.f32 0.0, %v116
    %v118 = vpop.f32.mrf.mxu0
    %v119 = vadd.f32 0.0, %v118
    %120 = vdwg.mxu0
    %v121 = vpack.c.bf16 %v109, %v107
    %v122 = vld [vmem:[#allocation2] sm:$0xf]
    %v123 = vld [vmem:[#allocation2 + $0x4] sm:$0xf]
    %v124 = vld [vmem:[#allocation2 + $0x8] sm:$0xf]
    %v125 = vld [vmem:[#allocation2 + $0xc] sm:$0xf]
    %v126 = vpack.c.bf16 %v114, %v112
    %v127 = vld [vmem:[#allocation2 + $0x10] sm:$0xf]
    %v128 = vld [vmem:[#allocation2 + $0x14] sm:$0xf]
    %v129 = vld [vmem:[#allocation2 + $0x18] sm:$0xf]
    %v130 = vld [vmem:[#allocation2 + $0x1c] sm:$0xf]
    %v135 = vunpack.c.l.b16 %v127
    %v136 = vunpack.c.l.b16 %v128
    %v137 = vunpack.c.l.b16 %v129
    %v138 = vunpack.c.l.b16 %v130
    %v139 = vpack.c.b16 %v136, %v135
    %v140 = vpack.c.b16 %v138, %v137
    %vm143 = vcmask 261120
    %v145 = vsel %vm143, %v126, 0
    %147 = vmatpush.bf16.msra.mxu0 0
    %148 = vmatpush.bf16.msra.mxu0 0
    %149 = vmatpush.bf16.msra.mxu0 0
    %150 = vmatpush.bf16.msra.mxu0 0
    %151 = vmatpush.bf16.msra.mxu0 0
    %152 = vmatpush.bf16.msra.mxu0 0
    %153 = vmatpush.bf16.msra.mxu0 %v140
    %154 = vmatpush.bf16.msra.mxu0 %v139
    %155 = vmatmul.bf16.gmra.mxu0 %v145
    %v156 = vpop.f32.mrf.mxu0
    %v157 = vadd.f32 0.0, %v156
    %v158 = vpop.f32.mrf.mxu0
    %v159 = vadd.f32 0.0, %v158
    %160 = vdwg.mxu0
    %v165 = vunpack.c.l.b16 %v122
    %v166 = vunpack.c.l.b16 %v123
    %v167 = vunpack.c.l.b16 %v124
    %v168 = vunpack.c.l.b16 %v125
    %v169 = vpack.c.b16 %v166, %v165
    %v170 = vpack.c.b16 %v168, %v167
    %v174 = vsel %vm143, %v121, 0
    %176 = vmatpush.bf16.msra.mxu0 0
    %177 = vmatpush.bf16.msra.mxu0 0
    %178 = vmatpush.bf16.msra.mxu0 0
    %179 = vmatpush.bf16.msra.mxu0 0
    %180 = vmatpush.bf16.msra.mxu0 0
    %181 = vmatpush.bf16.msra.mxu0 0
    %182 = vmatpush.bf16.msra.mxu0 %v170
    %183 = vmatpush.bf16.msra.mxu0 %v169
    %184 = vmatmul.bf16.gmra.mxu0 %v174
    %v185 = vpop.f32.mrf.mxu0
    %v186 = vadd.f32 %v157, %v185
    %v187 = vpop.f32.mrf.mxu0
    %v188 = vadd.f32 %v159, %v187
    %189 = vdwg.mxu0
    %v190 = vpack.c.bf16 %v119, %v117
    %v191 = vld [vmem:[#allocation2 + $0x20] sm:$0xf]
    %v192 = vld [vmem:[#allocation2 + $0x24] sm:$0xf]
    %v193 = vld [vmem:[#allocation2 + $0x28] sm:$0xf]
    %v194 = vld [vmem:[#allocation2 + $0x2c] sm:$0xf]
    %v199 = vunpack.c.l.b16 %v191
    %v200 = vunpack.c.l.b16 %v192
    %v201 = vunpack.c.l.b16 %v193
    %v202 = vunpack.c.l.b16 %v194
    %v203 = vpack.c.b16 %v200, %v199
    %v204 = vpack.c.b16 %v202, %v201
    %v208 = vsel %vm143, %v190, 0
    %210 = vmatpush.bf16.msra.mxu0 0
    %211 = vmatpush.bf16.msra.mxu0 0
    %212 = vmatpush.bf16.msra.mxu0 0
    %213 = vmatpush.bf16.msra.mxu0 0
    %214 = vmatpush.bf16.msra.mxu0 0
    %215 = vmatpush.bf16.msra.mxu0 0
    %216 = vmatpush.bf16.msra.mxu0 %v204
    %217 = vmatpush.bf16.msra.mxu0 %v203
    %218 = vmatmul.bf16.gmra.mxu0 %v208
    %v219 = vpop.f32.mrf.mxu0
    %v220 = vadd.f32 0.0, %v219
    %v221 = vpop.f32.mrf.mxu0
    %v222 = vadd.f32 0.0, %v221
    %223 = vdwg.mxu0
    %v224 = vadd.f32 %v186, %v220
    %v225 = vadd.f32 %v188, %v222
    %v226 = vld [vmem:[%s3] sm:$0x1]
    %v227 = vperm.slane %v226, 0
    %v228 = vadd.f32 %v224, %v227
    %v229 = vadd.f32 %v225, %v227
    %v230 = vld [vmem:[%s1 + $0x18] sm:$0xf]
    %v231 = vld [vmem:[%s1 + $0x1c] sm:$0xf]
    %v232 = vld [vmem:[%s1 + $0x20] sm:$0xf]
    %v233 = vld [vmem:[%s1 + $0x24] sm:$0xf]
    %v234 = vpack.c.bf16 %v229, %v228
    %v239 = vunpack.c.l.b16 %v230
    %v240 = vunpack.c.l.b16 %v231
    %v241 = vunpack.c.l.b16 %v232
    %v242 = vunpack.c.l.b16 %v233
    %v243 = vpack.c.b16 %v240, %v239
    %v244 = vpack.c.b16 %v242, %v241
    %v246 = vsel %vm47, %v243, 0
    %v249 = vsel %vm47, %v244, 0
    %251 = vmatpush.bf16.msra.mxu0 0
    %252 = vmatpush.bf16.msra.mxu0 0
    %253 = vmatpush.bf16.msra.mxu0 0
    %254 = vmatpush.bf16.msra.mxu0 0
    %255 = vmatpush.bf16.msra.mxu0 0
    %256 = vmatpush.bf16.msra.mxu0 0
    %257 = vmatpush.bf16.msra.mxu0 0
    %258 = vmatpush.bf16.msra.mxu0 %v234
    %259 = vmatmul.bf16.gmra.mxu0 %v246
    %v260 = vpop.f32.mrf.mxu0
    %v261 = vadd.f32 0.0, %v260
    %v262 = vpop.f32.mrf.mxu0
    %v263 = vadd.f32 0.0, %v262
    %264 = vmatmul.bf16.gmra.mxu0 %v249
    %v265 = vpop.f32.mrf.mxu0
    %v266 = vadd.f32 0.0, %v265
    %v267 = vpop.f32.mrf.mxu0
    %v268 = vadd.f32 0.0, %v267
    %269 = vdwg.mxu0
    %v270 = vpack.c.bf16 %v261, %v261
    %v271 = vld [vmem:[#allocation2 + $0x30] sm:$0xf]
    %v272 = vld [vmem:[#allocation2 + $0x34] sm:$0xf]
    %v273 = vld [vmem:[#allocation2 + $0x38] sm:$0xf]
    %v274 = vld [vmem:[#allocation2 + $0x3c] sm:$0xf]
    %v275 = vld [vmem:[#allocation2 + $0x40] sm:$0xf]
    %v276 = vld [vmem:[#allocation2 + $0x44] sm:$0xf]
    %v277 = vld [vmem:[#allocation2 + $0x48] sm:$0xf]
    %v278 = vld [vmem:[#allocation2 + $0x4c] sm:$0xf]
    %v279 = vld [vmem:[#allocation2 + $0x50] sm:$0xf]
    %v280 = vld [vmem:[#allocation2 + $0x54] sm:$0xf]
    %v281 = vld [vmem:[#allocation2 + $0x58] sm:$0xf]
    %v282 = vld [vmem:[#allocation2 + $0x5c] sm:$0xf]
    %v283 = vld [vmem:[#allocation2 + $0x60] sm:$0xf]
    %v284 = vld [vmem:[#allocation2 + $0x64] sm:$0xf]
    %v285 = vld [vmem:[#allocation2 + $0x68] sm:$0xf]
    %v286 = vld [vmem:[#allocation2 + $0x6c] sm:$0xf]
    %v287 = vpack.c.bf16 %v263, %v263
    %v288 = vld [vmem:[#allocation2 + $0x70] sm:$0xf]
    %v289 = vld [vmem:[#allocation2 + $0x74] sm:$0xf]
    %v290 = vld [vmem:[#allocation2 + $0x78] sm:$0xf]
    %v291 = vld [vmem:[#allocation2 + $0x7c] sm:$0xf]
    %v292 = vld [vmem:[#allocation2 + $0x80] sm:$0xf]
    %v293 = vld [vmem:[#allocation2 + $0x84] sm:$0xf]
    %v294 = vld [vmem:[#allocation2 + $0x88] sm:$0xf]
    %v295 = vld [vmem:[#allocation2 + $0x8c] sm:$0xf]
    %v296 = vld [vmem:[#allocation2 + $0x90] sm:$0xf]
    %v297 = vld [vmem:[#allocation2 + $0x94] sm:$0xf]
    %v298 = vld [vmem:[#allocation2 + $0x98] sm:$0xf]
    %v299 = vld [vmem:[#allocation2 + $0x9c] sm:$0xf]
    %v300 = vld [vmem:[#allocation2 + $0xa0] sm:$0xf]
    %v301 = vld [vmem:[#allocation2 + $0xa4] sm:$0xf]
    %v302 = vld [vmem:[#allocation2 + $0xa8] sm:$0xf]
    %v303 = vld [vmem:[#allocation2 + $0xac] sm:$0xf]
    %v320 = vunpack.c.l.b16 %v288
    %v321 = vunpack.c.l.b16 %v289
    %v322 = vunpack.c.l.b16 %v290
    %v323 = vunpack.c.l.b16 %v291
    %v324 = vunpack.c.l.b16 %v292
    %v325 = vunpack.c.l.b16 %v293
    %v326 = vunpack.c.l.b16 %v294
    %v327 = vunpack.c.l.b16 %v295
    %v328 = vunpack.c.l.b16 %v296
    %v329 = vunpack.c.l.b16 %v297
    %v330 = vunpack.c.l.b16 %v298
    %v331 = vunpack.c.l.b16 %v299
    %v332 = vunpack.c.l.b16 %v300
    %v333 = vunpack.c.l.b16 %v301
    %v334 = vunpack.c.l.b16 %v302
    %v335 = vunpack.c.l.b16 %v303
    %v336 = vpack.c.b16 %v321, %v320
    %v337 = vpack.c.b16 %v323, %v322
    %v338 = vpack.c.b16 %v325, %v324
    %v339 = vpack.c.b16 %v327, %v326
    %v340 = vpack.c.b16 %v329, %v328
    %v341 = vpack.c.b16 %v331, %v330
    %v342 = vpack.c.b16 %v333, %v332
    %v343 = vpack.c.b16 %v335, %v334
    %352 = vmatpush.bf16.msra.mxu0 %v343
    %353 = vmatpush.bf16.msra.mxu0 %v342
    %354 = vmatpush.bf16.msra.mxu0 %v341
    %355 = vmatpush.bf16.msra.mxu0 %v340
    %356 = vmatpush.bf16.msra.mxu0 %v339
    %357 = vmatpush.bf16.msra.mxu0 %v338
    %358 = vmatpush.bf16.msra.mxu0 %v337
    %359 = vmatpush.bf16.msra.mxu0 %v336
    %360 = vmatmul.bf16.gmra.mxu0 %v287
    %v361 = vpop.f32.mrf.mxu0
    %v362 = vadd.f32 0.0, %v361
    %v363 = vpop.f32.mrf.mxu0
    %364 = vdwg.mxu0
    %v381 = vunpack.c.l.b16 %v271
    %v382 = vunpack.c.l.b16 %v272
    %v383 = vunpack.c.l.b16 %v273
    %v384 = vunpack.c.l.b16 %v274
    %v385 = vunpack.c.l.b16 %v275
    %v386 = vunpack.c.l.b16 %v276
    %v387 = vunpack.c.l.b16 %v277
    %v388 = vunpack.c.l.b16 %v278
    %v389 = vunpack.c.l.b16 %v279
    %v390 = vunpack.c.l.b16 %v280
    %v391 = vunpack.c.l.b16 %v281
    %v392 = vunpack.c.l.b16 %v282
    %v393 = vunpack.c.l.b16 %v283
    %v394 = vunpack.c.l.b16 %v284
    %v395 = vunpack.c.l.b16 %v285
    %v396 = vunpack.c.l.b16 %v286
    %v397 = vpack.c.b16 %v382, %v381
    %v398 = vpack.c.b16 %v384, %v383
    %v399 = vpack.c.b16 %v386, %v385
    %v400 = vpack.c.b16 %v388, %v387
    %v401 = vpack.c.b16 %v390, %v389
    %v402 = vpack.c.b16 %v392, %v391
    %v403 = vpack.c.b16 %v394, %v393
    %v404 = vpack.c.b16 %v396, %v395
    %413 = vmatpush.bf16.msra.mxu0 %v404
    %414 = vmatpush.bf16.msra.mxu0 %v403
    %415 = vmatpush.bf16.msra.mxu0 %v402
    %416 = vmatpush.bf16.msra.mxu0 %v401
    %417 = vmatpush.bf16.msra.mxu0 %v400
    %418 = vmatpush.bf16.msra.mxu0 %v399
    %419 = vmatpush.bf16.msra.mxu0 %v398
    %420 = vmatpush.bf16.msra.mxu0 %v397
    %421 = vmatmul.bf16.gmra.mxu0 %v270
    %v422 = vpop.f32.mrf.mxu0
    %v423 = vadd.f32 %v362, %v422
    %v424 = vpop.f32.mrf.mxu0
    %425 = vdwg.mxu0
    %v426 = vpack.c.bf16 %v266, %v266
    %v427 = vld [vmem:[#allocation2 + $0xb0] sm:$0xf]
    %v428 = vld [vmem:[#allocation2 + $0xb4] sm:$0xf]
    %v429 = vld [vmem:[#allocation2 + $0xb8] sm:$0xf]
    %v430 = vld [vmem:[#allocation2 + $0xbc] sm:$0xf]
    %v431 = vld [vmem:[#allocation2 + $0xc0] sm:$0xf]
    %v432 = vld [vmem:[#allocation2 + $0xc4] sm:$0xf]
    %v433 = vld [vmem:[#allocation2 + $0xc8] sm:$0xf]
    %v434 = vld [vmem:[#allocation2 + $0xcc] sm:$0xf]
    %v435 = vld [vmem:[#allocation2 + $0xd0] sm:$0xf]
    %v436 = vld [vmem:[#allocation2 + $0xd4] sm:$0xf]
    %v437 = vld [vmem:[#allocation2 + $0xd8] sm:$0xf]
    %v438 = vld [vmem:[#allocation2 + $0xdc] sm:$0xf]
    %v439 = vld [vmem:[#allocation2 + $0xe0] sm:$0xf]
    %v440 = vld [vmem:[#allocation2 + $0xe4] sm:$0xf]
    %v441 = vld [vmem:[#allocation2 + $0xe8] sm:$0xf]
    %v442 = vld [vmem:[#allocation2 + $0xec] sm:$0xf]
    %v459 = vunpack.c.l.b16 %v427
    %v460 = vunpack.c.l.b16 %v428
    %v461 = vunpack.c.l.b16 %v429
    %v462 = vunpack.c.l.b16 %v430
    %v463 = vunpack.c.l.b16 %v431
    %v464 = vunpack.c.l.b16 %v432
    %v465 = vunpack.c.l.b16 %v433
    %v466 = vunpack.c.l.b16 %v434
    %v467 = vunpack.c.l.b16 %v435
    %v468 = vunpack.c.l.b16 %v436
    %v469 = vunpack.c.l.b16 %v437
    %v470 = vunpack.c.l.b16 %v438
    %v471 = vunpack.c.l.b16 %v439
    %v472 = vunpack.c.l.b16 %v440
    %v473 = vunpack.c.l.b16 %v441
    %v474 = vunpack.c.l.b16 %v442
    %v475 = vpack.c.b16 %v460, %v459
    %v476 = vpack.c.b16 %v462, %v461
    %v477 = vpack.c.b16 %v464, %v463
    %v478 = vpack.c.b16 %v466, %v465
    %v479 = vpack.c.b16 %v468, %v467
    %v480 = vpack.c.b16 %v470, %v469
    %v481 = vpack.c.b16 %v472, %v471
    %v482 = vpack.c.b16 %v474, %v473
    %491 = vmatpush.bf16.msra.mxu0 %v482
    %492 = vmatpush.bf16.msra.mxu0 %v481
    %493 = vmatpush.bf16.msra.mxu0 %v480
    %494 = vmatpush.bf16.msra.mxu0 %v479
    %495 = vmatpush.bf16.msra.mxu0 %v478
    %496 = vmatpush.bf16.msra.mxu0 %v477
    %497 = vmatpush.bf16.msra.mxu0 %v476
    %498 = vmatpush.bf16.msra.mxu0 %v475
    %499 = vmatmul.bf16.gmra.mxu0 %v426
    %v500 = vpop.f32.mrf.mxu0
    %v501 = vadd.f32 0.0, %v500
    %v502 = vpop.f32.mrf.mxu0
    %503 = vdwg.mxu0
    %v504 = vadd.f32 %v423, %v501
    %v505 = vpack.c.bf16 %v268, %v268
    %v506 = vld [vmem:[#allocation2 + $0xf0] sm:$0xf]
    %v507 = vld [vmem:[#allocation2 + $0xf4] sm:$0xf]
    %v508 = vld [vmem:[#allocation2 + $0xf8] sm:$0xf]
    %v509 = vld [vmem:[#allocation2 + $0xfc] sm:$0xf]
    %v510 = vld [vmem:[#allocation2 + $0x100] sm:$0xf]
    %v511 = vld [vmem:[#allocation2 + $0x104] sm:$0xf]
    %v512 = vld [vmem:[#allocation2 + $0x108] sm:$0xf]
    %v513 = vld [vmem:[#allocation2 + $0x10c] sm:$0xf]
    %v514 = vld [vmem:[#allocation2 + $0x110] sm:$0xf]
    %v515 = vld [vmem:[#allocation2 + $0x114] sm:$0xf]
    %v516 = vld [vmem:[#allocation2 + $0x118] sm:$0xf]
    %v517 = vld [vmem:[#allocation2 + $0x11c] sm:$0xf]
    %v518 = vld [vmem:[#allocation2 + $0x120] sm:$0xf]
    %v519 = vld [vmem:[#allocation2 + $0x124] sm:$0xf]
    %v520 = vld [vmem:[#allocation2 + $0x128] sm:$0xf]
    %v521 = vld [vmem:[#allocation2 + $0x12c] sm:$0xf]
    %v538 = vunpack.c.l.b16 %v506
    %v539 = vunpack.c.l.b16 %v507
    %v540 = vunpack.c.l.b16 %v508
    %v541 = vunpack.c.l.b16 %v509
    %v542 = vunpack.c.l.b16 %v510
    %v543 = vunpack.c.l.b16 %v511
    %v544 = vunpack.c.l.b16 %v512
    %v545 = vunpack.c.l.b16 %v513
    %v546 = vunpack.c.l.b16 %v514
    %v547 = vunpack.c.l.b16 %v515
    %v548 = vunpack.c.l.b16 %v516
    %v549 = vunpack.c.l.b16 %v517
    %v550 = vunpack.c.l.b16 %v518
    %v551 = vunpack.c.l.b16 %v519
    %v552 = vunpack.c.l.b16 %v520
    %v553 = vunpack.c.l.b16 %v521
    %v554 = vpack.c.b16 %v539, %v538
    %v555 = vpack.c.b16 %v541, %v540
    %v556 = vpack.c.b16 %v543, %v542
    %v557 = vpack.c.b16 %v545, %v544
    %v558 = vpack.c.b16 %v547, %v546
    %v559 = vpack.c.b16 %v549, %v548
    %v560 = vpack.c.b16 %v551, %v550
    %v561 = vpack.c.b16 %v553, %v552
    %570 = vmatpush.bf16.msra.mxu0 %v561
    %571 = vmatpush.bf16.msra.mxu0 %v560
    %572 = vmatpush.bf16.msra.mxu0 %v559
    %573 = vmatpush.bf16.msra.mxu0 %v558
    %574 = vmatpush.bf16.msra.mxu0 %v557
    %575 = vmatpush.bf16.msra.mxu0 %v556
    %576 = vmatpush.bf16.msra.mxu0 %v555
    %577 = vmatpush.bf16.msra.mxu0 %v554
    %578 = vmatmul.bf16.gmra.mxu0 %v505
    %v579 = vpop.f32.mrf.mxu0
    %v580 = vadd.f32 0.0, %v579
    %v581 = vpop.f32.mrf.mxu0
    %582 = vdwg.mxu0
    %v583 = vadd.f32 %v504, %v580
    %v584 = vld [vmem:[%s3 + $0x8] sm:$0x1]
    %v585 = vperm.slane %v584, 0
    %v586 = vadd.f32 %v583, %v585
    %v587 = vld [vmem:[%s1 + $0x28] sm:$0xf]
    %v588 = vld [vmem:[%s1 + $0x2c] sm:$0xf]
    %v589 = vld [vmem:[%s1 + $0x30] sm:$0xf]
    %v590 = vpack.c.bf16 %v586, %v586
    %v594 = vunpack.c.l.b16 %v587
    %v595 = vunpack.c.l.b16 %v588
    %v596 = vunpack.c.l.b16 %v589
    %v597 = vpack.c.b16 %v595, %v594
    %v598 = vpack.c.b16 %v596, %v596
    %vm599 = vcmask 64512
    %v601 = vsel %vm599, %v597, 0
    %v604 = vsel %vm599, %v598, 0
    %vm606 = vcmask 1043456
    %v608 = vsel %vm606, %v590, 0
    %610 = vmatpush.bf16.msra.mxu0 0
    %611 = vmatpush.bf16.msra.mxu0 0
    %612 = vmatpush.bf16.msra.mxu0 0
    %613 = vmatpush.bf16.msra.mxu0 0
    %614 = vmatpush.bf16.msra.mxu0 0
    %615 = vmatpush.bf16.msra.mxu0 0
    %616 = vmatpush.bf16.msra.mxu0 0
    %617 = vmatpush.bf16.msra.mxu0 %v608
    %618 = vmatmul.bf16.gmra.mxu0 %v601
    %v619 = vpop.f32.mrf.mxu0
    %v620 = vadd.f32 0.0, %v619
    %v621 = vpop.f32.mrf.mxu0
    %v622 = vadd.f32 0.0, %v621
    %623 = vmatmul.bf16.gmra.mxu0 %v604
    %v624 = vpop.f32.mrf.mxu0
    %v625 = vadd.f32 0.0, %v624
    %v626 = vpop.f32.mrf.mxu0
    %627 = vdwg.mxu0
    %v628 = vpack.c.bf16 %v620, %v620
    %v629 = vld [vmem:[#allocation2 + $0x130] sm:$0xf]
    %v630 = vld [vmem:[#allocation2 + $0x134] sm:$0xf]
    %v631 = vld [vmem:[#allocation2 + $0x138] sm:$0xf]
    %v632 = vld [vmem:[#allocation2 + $0x13c] sm:$0xf]
    %v633 = vld [vmem:[#allocation2 + $0x140] sm:$0xf]
    %v634 = vld [vmem:[#allocation2 + $0x144] sm:$0xf]
    %v635 = vld [vmem:[#allocation2 + $0x148] sm:$0xf]
    %v636 = vld [vmem:[#allocation2 + $0x14c] sm:$0xf]
    %v637 = vld [vmem:[#allocation2 + $0x150] sm:$0xf]
    %v638 = vld [vmem:[#allocation2 + $0x154] sm:$0xf]
    %v639 = vld [vmem:[#allocation2 + $0x158] sm:$0xf]
    %v640 = vld [vmem:[#allocation2 + $0x15c] sm:$0xf]
    %v641 = vld [vmem:[#allocation2 + $0x160] sm:$0xf]
    %v642 = vld [vmem:[#allocation2 + $0x164] sm:$0xf]
    %v643 = vld [vmem:[#allocation2 + $0x168] sm:$0xf]
    %v644 = vld [vmem:[#allocation2 + $0x16c] sm:$0xf]
    %v645 = vpack.c.bf16 %v622, %v622
    %v646 = vld [vmem:[#allocation2 + $0x170] sm:$0xf]
    %v647 = vld [vmem:[#allocation2 + $0x174] sm:$0xf]
    %v648 = vld [vmem:[#allocation2 + $0x178] sm:$0xf]
    %v649 = vld [vmem:[#allocation2 + $0x17c] sm:$0xf]
    %v650 = vld [vmem:[#allocation2 + $0x180] sm:$0xf]
    %v651 = vld [vmem:[#allocation2 + $0x184] sm:$0xf]
    %v652 = vld [vmem:[#allocation2 + $0x188] sm:$0xf]
    %v653 = vld [vmem:[#allocation2 + $0x18c] sm:$0xf]
    %v654 = vld [vmem:[#allocation2 + $0x190] sm:$0xf]
    %v655 = vld [vmem:[#allocation2 + $0x194] sm:$0xf]
    %v656 = vld [vmem:[#allocation2 + $0x198] sm:$0xf]
    %v657 = vld [vmem:[#allocation2 + $0x19c] sm:$0xf]
    %v658 = vld [vmem:[#allocation2 + $0x1a0] sm:$0xf]
    %v659 = vld [vmem:[#allocation2 + $0x1a4] sm:$0xf]
    %v660 = vld [vmem:[#allocation2 + $0x1a8] sm:$0xf]
    %v661 = vld [vmem:[#allocation2 + $0x1ac] sm:$0xf]
    %v678 = vunpack.c.l.b16 %v646
    %v679 = vunpack.c.l.b16 %v647
    %v680 = vunpack.c.l.b16 %v648
    %v681 = vunpack.c.l.b16 %v649
    %v682 = vunpack.c.l.b16 %v650
    %v683 = vunpack.c.l.b16 %v651
    %v684 = vunpack.c.l.b16 %v652
    %v685 = vunpack.c.l.b16 %v653
    %v686 = vunpack.c.l.b16 %v654
    %v687 = vunpack.c.l.b16 %v655
    %v688 = vunpack.c.l.b16 %v656
    %v689 = vunpack.c.l.b16 %v657
    %v690 = vunpack.c.l.b16 %v658
    %v691 = vunpack.c.l.b16 %v659
    %v692 = vunpack.c.l.b16 %v660
    %v693 = vunpack.c.l.b16 %v661
    %v694 = vpack.c.b16 %v679, %v678
    %v695 = vpack.c.b16 %v681, %v680
    %v696 = vpack.c.b16 %v683, %v682
    %v697 = vpack.c.b16 %v685, %v684
    %v698 = vpack.c.b16 %v687, %v686
    %v699 = vpack.c.b16 %v689, %v688
    %v700 = vpack.c.b16 %v691, %v690
    %v701 = vpack.c.b16 %v693, %v692
    %710 = vmatpush.bf16.msra.mxu0 %v701
    %711 = vmatpush.bf16.msra.mxu0 %v700
    %712 = vmatpush.bf16.msra.mxu0 %v699
    %713 = vmatpush.bf16.msra.mxu0 %v698
    %714 = vmatpush.bf16.msra.mxu0 %v697
    %715 = vmatpush.bf16.msra.mxu0 %v696
    %716 = vmatpush.bf16.msra.mxu0 %v695
    %717 = vmatpush.bf16.msra.mxu0 %v694
    %718 = vmatmul.bf16.gmra.mxu0 %v645
    %v719 = vpop.f32.mrf.mxu0
    %v720 = vadd.f32 0.0, %v719
    %v721 = vpop.f32.mrf.mxu0
    %722 = vdwg.mxu0
    %v739 = vunpack.c.l.b16 %v629
    %v740 = vunpack.c.l.b16 %v630
    %v741 = vunpack.c.l.b16 %v631
    %v742 = vunpack.c.l.b16 %v632
    %v743 = vunpack.c.l.b16 %v633
    %v744 = vunpack.c.l.b16 %v634
    %v745 = vunpack.c.l.b16 %v635
    %v746 = vunpack.c.l.b16 %v636
    %v747 = vunpack.c.l.b16 %v637
    %v748 = vunpack.c.l.b16 %v638
    %v749 = vunpack.c.l.b16 %v639
    %v750 = vunpack.c.l.b16 %v640
    %v751 = vunpack.c.l.b16 %v641
    %v752 = vunpack.c.l.b16 %v642
    %v753 = vunpack.c.l.b16 %v643
    %v754 = vunpack.c.l.b16 %v644
    %v755 = vpack.c.b16 %v740, %v739
    %v756 = vpack.c.b16 %v742, %v741
    %v757 = vpack.c.b16 %v744, %v743
    %v758 = vpack.c.b16 %v746, %v745
    %v759 = vpack.c.b16 %v748, %v747
    %v760 = vpack.c.b16 %v750, %v749
    %v761 = vpack.c.b16 %v752, %v751
    %v762 = vpack.c.b16 %v754, %v753
    %771 = vmatpush.bf16.msra.mxu0 %v762
    %772 = vmatpush.bf16.msra.mxu0 %v761
    %773 = vmatpush.bf16.msra.mxu0 %v760
    %774 = vmatpush.bf16.msra.mxu0 %v759
    %775 = vmatpush.bf16.msra.mxu0 %v758
    %776 = vmatpush.bf16.msra.mxu0 %v757
    %777 = vmatpush.bf16.msra.mxu0 %v756
    %778 = vmatpush.bf16.msra.mxu0 %v755
    %779 = vmatmul.bf16.gmra.mxu0 %v628
    %v780 = vpop.f32.mrf.mxu0
    %v781 = vadd.f32 %v720, %v780
    %v782 = vpop.f32.mrf.mxu0
    %783 = vdwg.mxu0
    %v784 = vpack.c.bf16 %v625, %v625
    %v785 = vld [vmem:[#allocation2 + $0x1b0] sm:$0xf]
    %v786 = vld [vmem:[#allocation2 + $0x1b4] sm:$0xf]
    %v787 = vld [vmem:[#allocation2 + $0x1b8] sm:$0xf]
    %v788 = vld [vmem:[#allocation2 + $0x1bc] sm:$0xf]
    %v789 = vld [vmem:[#allocation2 + $0x1c0] sm:$0xf]
    %v790 = vld [vmem:[#allocation2 + $0x1c4] sm:$0xf]
    %v791 = vld [vmem:[#allocation2 + $0x1c8] sm:$0xf]
    %v792 = vld [vmem:[#allocation2 + $0x1cc] sm:$0xf]
    %v793 = vld [vmem:[#allocation2 + $0x1d0] sm:$0xf]
    %v794 = vld [vmem:[#allocation2 + $0x1d4] sm:$0xf]
    %v795 = vld [vmem:[#allocation2 + $0x1d8] sm:$0xf]
    %v796 = vld [vmem:[#allocation2 + $0x1dc] sm:$0xf]
    %v797 = vld [vmem:[#allocation2 + $0x1e0] sm:$0xf]
    %v798 = vld [vmem:[#allocation2 + $0x1e4] sm:$0xf]
    %v799 = vld [vmem:[#allocation2 + $0x1e8] sm:$0xf]
    %v800 = vld [vmem:[#allocation2 + $0x1ec] sm:$0xf]
    %v817 = vunpack.c.l.b16 %v785
    %v818 = vunpack.c.l.b16 %v786
    %v819 = vunpack.c.l.b16 %v787
    %v820 = vunpack.c.l.b16 %v788
    %v821 = vunpack.c.l.b16 %v789
    %v822 = vunpack.c.l.b16 %v790
    %v823 = vunpack.c.l.b16 %v791
    %v824 = vunpack.c.l.b16 %v792
    %v825 = vunpack.c.l.b16 %v793
    %v826 = vunpack.c.l.b16 %v794
    %v827 = vunpack.c.l.b16 %v795
    %v828 = vunpack.c.l.b16 %v796
    %v829 = vunpack.c.l.b16 %v797
    %v830 = vunpack.c.l.b16 %v798
    %v831 = vunpack.c.l.b16 %v799
    %v832 = vunpack.c.l.b16 %v800
    %v833 = vpack.c.b16 %v818, %v817
    %v834 = vpack.c.b16 %v820, %v819
    %v835 = vpack.c.b16 %v822, %v821
    %v836 = vpack.c.b16 %v824, %v823
    %v837 = vpack.c.b16 %v826, %v825
    %v838 = vpack.c.b16 %v828, %v827
    %v839 = vpack.c.b16 %v830, %v829
    %v840 = vpack.c.b16 %v832, %v831
    %849 = vmatpush.bf16.msra.mxu0 %v840
    %850 = vmatpush.bf16.msra.mxu0 %v839
    %851 = vmatpush.bf16.msra.mxu0 %v838
    %852 = vmatpush.bf16.msra.mxu0 %v837
    %853 = vmatpush.bf16.msra.mxu0 %v836
    %854 = vmatpush.bf16.msra.mxu0 %v835
    %855 = vmatpush.bf16.msra.mxu0 %v834
    %856 = vmatpush.bf16.msra.mxu0 %v833
    %857 = vmatmul.bf16.gmra.mxu0 %v784
    %v858 = vpop.f32.mrf.mxu0
    %v859 = vadd.f32 0.0, %v858
    %v860 = vpop.f32.mrf.mxu0
    %861 = vdwg.mxu0
    %v862 = vadd.f32 %v781, %v859
    %v863 = vld [vmem:[%s3 + $0x10] sm:$0x1]
    %v864 = vperm.slane %v863, 0
    %v865 = vadd.f32 %v862, %v864
    %v866 = vld [vmem:[%s1 + $0x38] sm:$0xf]
    %v867 = vld [vmem:[%s1 + $0x3c] sm:$0xf]
    %v868 = vld [vmem:[%s1 + $0x40] sm:$0xf]
    %v869 = vld [vmem:[%s1 + $0x44] sm:$0xf]
    %v870 = vpack.c.bf16 %v865, %v865
    %v875 = vunpack.c.l.b16 %v866
    %v876 = vunpack.c.l.b16 %v867
    %v877 = vunpack.c.l.b16 %v868
    %v878 = vunpack.c.l.b16 %v869
    %v879 = vpack.c.b16 %v876, %v875
    %v880 = vpack.c.b16 %v878, %v877
    %v882 = vsel %vm599, %v879, 0
    %v885 = vsel %vm599, %v880, 0
    %v888 = vsel %vm606, %v870, 0
    %890 = vmatpush.bf16.msra.mxu0 0
    %891 = vmatpush.bf16.msra.mxu0 0
    %892 = vmatpush.bf16.msra.mxu0 0
    %893 = vmatpush.bf16.msra.mxu0 0
    %894 = vmatpush.bf16.msra.mxu0 0
    %895 = vmatpush.bf16.msra.mxu0 0
    %896 = vmatpush.bf16.msra.mxu0 0
    %897 = vmatpush.bf16.msra.mxu0 %v888
    %898 = vmatmul.bf16.gmra.mxu0 %v882
    %v899 = vpop.f32.mrf.mxu0
    %v900 = vadd.f32 0.0, %v899
    %v901 = vpop.f32.mrf.mxu0
    %v902 = vadd.f32 0.0, %v901
    %903 = vmatmul.bf16.gmra.mxu0 %v885
    %v904 = vpop.f32.mrf.mxu0
    %v905 = vadd.f32 0.0, %v904
    %v906 = vpop.f32.mrf.mxu0
    %v907 = vadd.f32 0.0, %v906
    %908 = vdwg.mxu0
    %v909 = vpack.c.bf16 %v900, %v900
    %v910 = vld [vmem:[#allocation2 + $0x1f0] sm:$0xf]
    %v911 = vld [vmem:[#allocation2 + $0x1f4] sm:$0xf]
    %v912 = vld [vmem:[#allocation2 + $0x1f8] sm:$0xf]
    %v913 = vld [vmem:[#allocation2 + $0x1fc] sm:$0xf]
    %v914 = vld [vmem:[#allocation2 + $0x200] sm:$0xf]
    %v915 = vld [vmem:[#allocation2 + $0x204] sm:$0xf]
    %v916 = vld [vmem:[#allocation2 + $0x208] sm:$0xf]
    %v917 = vld [vmem:[#allocation2 + $0x20c] sm:$0xf]
    %v918 = vld [vmem:[#allocation2 + $0x210] sm:$0xf]
    %v919 = vld [vmem:[#allocation2 + $0x214] sm:$0xf]
    %v920 = vld [vmem:[#allocation2 + $0x218] sm:$0xf]
    %v921 = vld [vmem:[#allocation2 + $0x21c] sm:$0xf]
    %v922 = vld [vmem:[#allocation2 + $0x220] sm:$0xf]
    %v923 = vld [vmem:[#allocation2 + $0x224] sm:$0xf]
    %v924 = vld [vmem:[#allocation2 + $0x228] sm:$0xf]
    %v925 = vld [vmem:[#allocation2 + $0x22c] sm:$0xf]
    %v926 = vpack.c.bf16 %v902, %v902
    %v927 = vld [vmem:[#allocation2 + $0x230] sm:$0xf]
    %v928 = vld [vmem:[#allocation2 + $0x234] sm:$0xf]
    %v929 = vld [vmem:[#allocation2 + $0x238] sm:$0xf]
    %v930 = vld [vmem:[#allocation2 + $0x23c] sm:$0xf]
    %v931 = vld [vmem:[#allocation2 + $0x240] sm:$0xf]
    %v932 = vld [vmem:[#allocation2 + $0x244] sm:$0xf]
    %v933 = vld [vmem:[#allocation2 + $0x248] sm:$0xf]
    %v934 = vld [vmem:[#allocation2 + $0x24c] sm:$0xf]
    %v935 = vld [vmem:[#allocation2 + $0x250] sm:$0xf]
    %v936 = vld [vmem:[#allocation2 + $0x254] sm:$0xf]
    %v937 = vld [vmem:[#allocation2 + $0x258] sm:$0xf]
    %v938 = vld [vmem:[#allocation2 + $0x25c] sm:$0xf]
    %v939 = vld [vmem:[#allocation2 + $0x260] sm:$0xf]
    %v940 = vld [vmem:[#allocation2 + $0x264] sm:$0xf]
    %v941 = vld [vmem:[#allocation2 + $0x268] sm:$0xf]
    %v942 = vld [vmem:[#allocation2 + $0x26c] sm:$0xf]
    %v959 = vunpack.c.l.b16 %v927
    %v960 = vunpack.c.l.b16 %v928
    %v961 = vunpack.c.l.b16 %v929
    %v962 = vunpack.c.l.b16 %v930
    %v963 = vunpack.c.l.b16 %v931
    %v964 = vunpack.c.l.b16 %v932
    %v965 = vunpack.c.l.b16 %v933
    %v966 = vunpack.c.l.b16 %v934
    %v967 = vunpack.c.l.b16 %v935
    %v968 = vunpack.c.l.b16 %v936
    %v969 = vunpack.c.l.b16 %v937
    %v970 = vunpack.c.l.b16 %v938
    %v971 = vunpack.c.l.b16 %v939
    %v972 = vunpack.c.l.b16 %v940
    %v973 = vunpack.c.l.b16 %v941
    %v974 = vunpack.c.l.b16 %v942
    %v975 = vpack.c.b16 %v960, %v959
    %v976 = vpack.c.b16 %v962, %v961
    %v977 = vpack.c.b16 %v964, %v963
    %v978 = vpack.c.b16 %v966, %v965
    %v979 = vpack.c.b16 %v968, %v967
    %v980 = vpack.c.b16 %v970, %v969
    %v981 = vpack.c.b16 %v972, %v971
    %v982 = vpack.c.b16 %v974, %v973
    %991 = vmatpush.bf16.msra.mxu0 %v982
    %992 = vmatpush.bf16.msra.mxu0 %v981
    %993 = vmatpush.bf16.msra.mxu0 %v980
    %994 = vmatpush.bf16.msra.mxu0 %v979
    %995 = vmatpush.bf16.msra.mxu0 %v978
    %996 = vmatpush.bf16.msra.mxu0 %v977
    %997 = vmatpush.bf16.msra.mxu0 %v976
    %998 = vmatpush.bf16.msra.mxu0 %v975
    %999 = vmatmul.bf16.gmra.mxu0 %v926
    %v1000 = vpop.f32.mrf.mxu0
    %v1001 = vadd.f32 0.0, %v1000
    %v1002 = vpop.f32.mrf.mxu0
    %1003 = vdwg.mxu0
    %v1020 = vunpack.c.l.b16 %v910
    %v1021 = vunpack.c.l.b16 %v911
    %v1022 = vunpack.c.l.b16 %v912
    %v1023 = vunpack.c.l.b16 %v913
    %v1024 = vunpack.c.l.b16 %v914
    %v1025 = vunpack.c.l.b16 %v915
    %v1026 = vunpack.c.l.b16 %v916
    %v1027 = vunpack.c.l.b16 %v917
    %v1028 = vunpack.c.l.b16 %v918
    %v1029 = vunpack.c.l.b16 %v919
    %v1030 = vunpack.c.l.b16 %v920
    %v1031 = vunpack.c.l.b16 %v921
    %v1032 = vunpack.c.l.b16 %v922
    %v1033 = vunpack.c.l.b16 %v923
    %v1034 = vunpack.c.l.b16 %v924
    %v1035 = vunpack.c.l.b16 %v925
    %v1036 = vpack.c.b16 %v1021, %v1020
    %v1037 = vpack.c.b16 %v1023, %v1022
    %v1038 = vpack.c.b16 %v1025, %v1024
    %v1039 = vpack.c.b16 %v1027, %v1026
    %v1040 = vpack.c.b16 %v1029, %v1028
    %v1041 = vpack.c.b16 %v1031, %v1030
    %v1042 = vpack.c.b16 %v1033, %v1032
    %v1043 = vpack.c.b16 %v1035, %v1034
    %1052 = vmatpush.bf16.msra.mxu0 %v1043
    %1053 = vmatpush.bf16.msra.mxu0 %v1042
    %1054 = vmatpush.bf16.msra.mxu0 %v1041
    %1055 = vmatpush.bf16.msra.mxu0 %v1040
    %1056 = vmatpush.bf16.msra.mxu0 %v1039
    %1057 = vmatpush.bf16.msra.mxu0 %v1038
    %1058 = vmatpush.bf16.msra.mxu0 %v1037
    %1059 = vmatpush.bf16.msra.mxu0 %v1036
    %1060 = vmatmul.bf16.gmra.mxu0 %v909
    %v1061 = vpop.f32.mrf.mxu0
    %v1062 = vadd.f32 %v1001, %v1061
    %v1063 = vpop.f32.mrf.mxu0
    %1064 = vdwg.mxu0
    %v1065 = vpack.c.bf16 %v905, %v905
    %v1066 = vld [vmem:[#allocation2 + $0x270] sm:$0xf]
    %v1067 = vld [vmem:[#allocation2 + $0x274] sm:$0xf]
    %v1068 = vld [vmem:[#allocation2 + $0x278] sm:$0xf]
    %v1069 = vld [vmem:[#allocation2 + $0x27c] sm:$0xf]
    %v1070 = vld [vmem:[#allocation2 + $0x280] sm:$0xf]
    %v1071 = vld [vmem:[#allocation2 + $0x284] sm:$0xf]
    %v1072 = vld [vmem:[#allocation2 + $0x288] sm:$0xf]
    %v1073 = vld [vmem:[#allocation2 + $0x28c] sm:$0xf]
    %v1074 = vld [vmem:[#allocation2 + $0x290] sm:$0xf]
    %v1075 = vld [vmem:[#allocation2 + $0x294] sm:$0xf]
    %v1076 = vld [vmem:[#allocation2 + $0x298] sm:$0xf]
    %v1077 = vld [vmem:[#allocation2 + $0x29c] sm:$0xf]
    %v1078 = vld [vmem:[#allocation2 + $0x2a0] sm:$0xf]
    %v1079 = vld [vmem:[#allocation2 + $0x2a4] sm:$0xf]
    %v1080 = vld [vmem:[#allocation2 + $0x2a8] sm:$0xf]
    %v1081 = vld [vmem:[#allocation2 + $0x2ac] sm:$0xf]
    %v1098 = vunpack.c.l.b16 %v1066
    %v1099 = vunpack.c.l.b16 %v1067
    %v1100 = vunpack.c.l.b16 %v1068
    %v1101 = vunpack.c.l.b16 %v1069
    %v1102 = vunpack.c.l.b16 %v1070
    %v1103 = vunpack.c.l.b16 %v1071
    %v1104 = vunpack.c.l.b16 %v1072
    %v1105 = vunpack.c.l.b16 %v1073
    %v1106 = vunpack.c.l.b16 %v1074
    %v1107 = vunpack.c.l.b16 %v1075
    %v1108 = vunpack.c.l.b16 %v1076
    %v1109 = vunpack.c.l.b16 %v1077
    %v1110 = vunpack.c.l.b16 %v1078
    %v1111 = vunpack.c.l.b16 %v1079
    %v1112 = vunpack.c.l.b16 %v1080
    %v1113 = vunpack.c.l.b16 %v1081
    %v1114 = vpack.c.b16 %v1099, %v1098
    %v1115 = vpack.c.b16 %v1101, %v1100
    %v1116 = vpack.c.b16 %v1103, %v1102
    %v1117 = vpack.c.b16 %v1105, %v1104
    %v1118 = vpack.c.b16 %v1107, %v1106
    %v1119 = vpack.c.b16 %v1109, %v1108
    %v1120 = vpack.c.b16 %v1111, %v1110
    %v1121 = vpack.c.b16 %v1113, %v1112
    %1130 = vmatpush.bf16.msra.mxu0 %v1121
    %1131 = vmatpush.bf16.msra.mxu0 %v1120
    %1132 = vmatpush.bf16.msra.mxu0 %v1119
    %1133 = vmatpush.bf16.msra.mxu0 %v1118
    %1134 = vmatpush.bf16.msra.mxu0 %v1117
    %1135 = vmatpush.bf16.msra.mxu0 %v1116
    %1136 = vmatpush.bf16.msra.mxu0 %v1115
    %1137 = vmatpush.bf16.msra.mxu0 %v1114
    %1138 = vmatmul.bf16.gmra.mxu0 %v1065
    %v1139 = vpop.f32.mrf.mxu0
    %v1140 = vadd.f32 0.0, %v1139
    %v1141 = vpop.f32.mrf.mxu0
    %1142 = vdwg.mxu0
    %v1143 = vadd.f32 %v1062, %v1140
    %v1144 = vpack.c.bf16 %v907, %v907
    %v1145 = vld [vmem:[#allocation2 + $0x2b0] sm:$0xf]
    %v1146 = vld [vmem:[#allocation2 + $0x2b4] sm:$0xf]
    %v1147 = vld [vmem:[#allocation2 + $0x2b8] sm:$0xf]
    %v1148 = vld [vmem:[#allocation2 + $0x2bc] sm:$0xf]
    %v1149 = vld [vmem:[#allocation2 + $0x2c0] sm:$0xf]
    %v1150 = vld [vmem:[#allocation2 + $0x2c4] sm:$0xf]
    %v1151 = vld [vmem:[#allocation2 + $0x2c8] sm:$0xf]
    %v1152 = vld [vmem:[#allocation2 + $0x2cc] sm:$0xf]
    %v1153 = vld [vmem:[#allocation2 + $0x2d0] sm:$0xf]
    %v1154 = vld [vmem:[#allocation2 + $0x2d4] sm:$0xf]
    %v1155 = vld [vmem:[#allocation2 + $0x2d8] sm:$0xf]
    %v1156 = vld [vmem:[#allocation2 + $0x2dc] sm:$0xf]
    %v1157 = vld [vmem:[#allocation2 + $0x2e0] sm:$0xf]
    %v1158 = vld [vmem:[#allocation2 + $0x2e4] sm:$0xf]
    %v1159 = vld [vmem:[#allocation2 + $0x2e8] sm:$0xf]
    %v1160 = vld [vmem:[#allocation2 + $0x2ec] sm:$0xf]
    %v1177 = vunpack.c.l.b16 %v1145
    %v1178 = vunpack.c.l.b16 %v1146
    %v1179 = vunpack.c.l.b16 %v1147
    %v1180 = vunpack.c.l.b16 %v1148
    %v1181 = vunpack.c.l.b16 %v1149
    %v1182 = vunpack.c.l.b16 %v1150
    %v1183 = vunpack.c.l.b16 %v1151
    %v1184 = vunpack.c.l.b16 %v1152
    %v1185 = vunpack.c.l.b16 %v1153
    %v1186 = vunpack.c.l.b16 %v1154
    %v1187 = vunpack.c.l.b16 %v1155
    %v1188 = vunpack.c.l.b16 %v1156
    %v1189 = vunpack.c.l.b16 %v1157
    %v1190 = vunpack.c.l.b16 %v1158
    %v1191 = vunpack.c.l.b16 %v1159
    %v1192 = vunpack.c.l.b16 %v1160
    %v1193 = vpack.c.b16 %v1178, %v1177
    %v1194 = vpack.c.b16 %v1180, %v1179
    %v1195 = vpack.c.b16 %v1182, %v1181
    %v1196 = vpack.c.b16 %v1184, %v1183
    %v1197 = vpack.c.b16 %v1186, %v1185
    %v1198 = vpack.c.b16 %v1188, %v1187
    %v1199 = vpack.c.b16 %v1190, %v1189
    %v1200 = vpack.c.b16 %v1192, %v1191
    %1209 = vmatpush.bf16.msra.mxu0 %v1200
    %1210 = vmatpush.bf16.msra.mxu0 %v1199
    %1211 = vmatpush.bf16.msra.mxu0 %v1198
    %1212 = vmatpush.bf16.msra.mxu0 %v1197
    %1213 = vmatpush.bf16.msra.mxu0 %v1196
    %1214 = vmatpush.bf16.msra.mxu0 %v1195
    %1215 = vmatpush.bf16.msra.mxu0 %v1194
    %1216 = vmatpush.bf16.msra.mxu0 %v1193
    %1217 = vmatmul.bf16.gmra.mxu0 %v1144
    %v1218 = vpop.f32.mrf.mxu0
    %v1219 = vadd.f32 0.0, %v1218
    %v1220 = vpop.f32.mrf.mxu0
    %1221 = vdwg.mxu0
    %v1222 = vadd.f32 %v1143, %v1219
    %v1223 = vld [vmem:[%s3 + $0x18] sm:$0x1]
    %v1224 = vperm.slane %v1223, 0
    %v1225 = vadd.f32 %v1222, %v1224
    %v1226 = vld [vmem:[%s1 + $0x48] sm:$0xf]
    %v1227 = vld [vmem:[%s1 + $0x4c] sm:$0xf]
    %v1228 = vld [vmem:[%s1 + $0x50] sm:$0xf]
    %v1229 = vld [vmem:[%s1 + $0x54] sm:$0xf]
    %v1230 = vld [vmem:[%s1 + $0x58] sm:$0xf]
    %v1231 = vld [vmem:[%s1 + $0x5c] sm:$0xf]
    %v1232 = vpack.c.bf16 %v65, %v64
    %v1239 = vunpack.c.l.b16 %v1226
    %v1240 = vunpack.c.l.b16 %v1227
    %v1241 = vunpack.c.l.b16 %v1228
    %v1242 = vunpack.c.l.b16 %v1229
    %v1243 = vunpack.c.l.b16 %v1230
    %v1244 = vunpack.c.l.b16 %v1231
    %v1245 = vpack.c.b16 %v1240, %v1239
    %v1246 = vpack.c.b16 %v1242, %v1241
    %v1247 = vpack.c.b16 %v1244, %v1243
    %v1249 = vsel %vm47, %v1245, 0
    %v1252 = vsel %vm47, %v1246, 0
    %v1255 = vsel %vm47, %v1247, 0
    %1257 = vmatpush.bf16.msra.mxu0 0
    %1258 = vmatpush.bf16.msra.mxu0 0
    %1259 = vmatpush.bf16.msra.mxu0 0
    %1260 = vmatpush.bf16.msra.mxu0 0
    %1261 = vmatpush.bf16.msra.mxu0 0
    %1262 = vmatpush.bf16.msra.mxu0 0
    %1263 = vmatpush.bf16.msra.mxu0 0
    %1264 = vmatpush.bf16.msra.mxu0 %v1232
    %1265 = vmatmul.bf16.gmra.mxu0 %v1249
    %v1266 = vpop.f32.mrf.mxu0
    %v1267 = vadd.f32 0.0, %v1266
    %v1268 = vpop.f32.mrf.mxu0
    %v1269 = vadd.f32 0.0, %v1268
    %1270 = vmatmul.bf16.gmra.mxu0 %v1252
    %v1271 = vpop.f32.mrf.mxu0
    %v1272 = vadd.f32 0.0, %v1271
    %v1273 = vpop.f32.mrf.mxu0
    %v1274 = vadd.f32 0.0, %v1273
    %1275 = vmatmul.bf16.gmra.mxu0 %v1255
    %v1276 = vpop.f32.mrf.mxu0
    %v1277 = vadd.f32 0.0, %v1276
    %v1278 = vpop.f32.mrf.mxu0
    %v1279 = vadd.f32 0.0, %v1278
    %1280 = vdwg.mxu0
    %v1281 = vpack.c.bf16 %v1269, %v1267
    %v1282 = vld [vmem:[#allocation2 + $0x2f0] sm:$0xf]
    %v1283 = vld [vmem:[#allocation2 + $0x2f4] sm:$0xf]
    %v1284 = vld [vmem:[#allocation2 + $0x2f8] sm:$0xf]
    %v1285 = vld [vmem:[#allocation2 + $0x2fc] sm:$0xf]
    %v1286 = vpack.c.bf16 %v1274, %v1272
    %v1287 = vld [vmem:[#allocation2 + $0x300] sm:$0xf]
    %v1288 = vld [vmem:[#allocation2 + $0x304] sm:$0xf]
    %v1289 = vld [vmem:[#allocation2 + $0x308] sm:$0xf]
    %v1290 = vld [vmem:[#allocation2 + $0x30c] sm:$0xf]
    %v1295 = vunpack.c.l.b16 %v1287
    %v1296 = vunpack.c.l.b16 %v1288
    %v1297 = vunpack.c.l.b16 %v1289
    %v1298 = vunpack.c.l.b16 %v1290
    %v1299 = vpack.c.b16 %v1296, %v1295
    %v1300 = vpack.c.b16 %v1298, %v1297
    %v1304 = vsel %vm143, %v1286, 0
    %1306 = vmatpush.bf16.msra.mxu0 0
    %1307 = vmatpush.bf16.msra.mxu0 0
    %1308 = vmatpush.bf16.msra.mxu0 0
    %1309 = vmatpush.bf16.msra.mxu0 0
    %1310 = vmatpush.bf16.msra.mxu0 0
    %1311 = vmatpush.bf16.msra.mxu0 0
    %1312 = vmatpush.bf16.msra.mxu0 %v1300
    %1313 = vmatpush.bf16.msra.mxu0 %v1299
    %1314 = vmatmul.bf16.gmra.mxu0 %v1304
    %v1315 = vpop.f32.mrf.mxu0
    %v1316 = vadd.f32 0.0, %v1315
    %v1317 = vpop.f32.mrf.mxu0
    %v1318 = vadd.f32 0.0, %v1317
    %1319 = vdwg.mxu0
    %v1324 = vunpack.c.l.b16 %v1282
    %v1325 = vunpack.c.l.b16 %v1283
    %v1326 = vunpack.c.l.b16 %v1284
    %v1327 = vunpack.c.l.b16 %v1285
    %v1328 = vpack.c.b16 %v1325, %v1324
    %v1329 = vpack.c.b16 %v1327, %v1326
    %v1333 = vsel %vm143, %v1281, 0
    %1335 = vmatpush.bf16.msra.mxu0 0
    %1336 = vmatpush.bf16.msra.mxu0 0
    %1337 = vmatpush.bf16.msra.mxu0 0
    %1338 = vmatpush.bf16.msra.mxu0 0
    %1339 = vmatpush.bf16.msra.mxu0 0
    %1340 = vmatpush.bf16.msra.mxu0 0
    %1341 = vmatpush.bf16.msra.mxu0 %v1329
    %1342 = vmatpush.bf16.msra.mxu0 %v1328
    %1343 = vmatmul.bf16.gmra.mxu0 %v1333
    %v1344 = vpop.f32.mrf.mxu0
    %v1345 = vadd.f32 %v1316, %v1344
    %v1346 = vpop.f32.mrf.mxu0
    %v1347 = vadd.f32 %v1318, %v1346
    %1348 = vdwg.mxu0
    %v1349 = vpack.c.bf16 %v1279, %v1277
    %v1350 = vld [vmem:[#allocation2 + $0x310] sm:$0xf]
    %v1351 = vld [vmem:[#allocation2 + $0x314] sm:$0xf]
    %v1352 = vld [vmem:[#allocation2 + $0x318] sm:$0xf]
    %v1353 = vld [vmem:[#allocation2 + $0x31c] sm:$0xf]
    %v1358 = vunpack.c.l.b16 %v1350
    %v1359 = vunpack.c.l.b16 %v1351
    %v1360 = vunpack.c.l.b16 %v1352
    %v1361 = vunpack.c.l.b16 %v1353
    %v1362 = vpack.c.b16 %v1359, %v1358
    %v1363 = vpack.c.b16 %v1361, %v1360
    %v1367 = vsel %vm143, %v1349, 0
    %1369 = vmatpush.bf16.msra.mxu0 0
    %1370 = vmatpush.bf16.msra.mxu0 0
    %1371 = vmatpush.bf16.msra.mxu0 0
    %1372 = vmatpush.bf16.msra.mxu0 0
    %1373 = vmatpush.bf16.msra.mxu0 0
    %1374 = vmatpush.bf16.msra.mxu0 0
    %1375 = vmatpush.bf16.msra.mxu0 %v1363
    %1376 = vmatpush.bf16.msra.mxu0 %v1362
    %1377 = vmatmul.bf16.gmra.mxu0 %v1367
    %v1378 = vpop.f32.mrf.mxu0
    %v1379 = vadd.f32 0.0, %v1378
    %v1380 = vpop.f32.mrf.mxu0
    %v1381 = vadd.f32 0.0, %v1380
    %1382 = vdwg.mxu0
    %v1383 = vadd.f32 %v1345, %v1379
    %v1384 = vadd.f32 %v1347, %v1381
    %v1385 = vld [vmem:[%s3 + $0x20] sm:$0x1]
    %v1386 = vperm.slane %v1385, 0
    %v1387 = vadd.f32 %v1383, %v1386
    %v1388 = vadd.f32 %v1384, %v1386
    %v1389 = vld [vmem:[%s1 + $0x60] sm:$0xf]
    %v1390 = vld [vmem:[%s1 + $0x64] sm:$0xf]
    %v1391 = vld [vmem:[%s1 + $0x68] sm:$0xf]
    %v1392 = vld [vmem:[%s1 + $0x6c] sm:$0xf]
    %v1393 = vpack.c.bf16 %v1388, %v1387
    %v1398 = vunpack.c.l.b16 %v1389
    %v1399 = vunpack.c.l.b16 %v1390
    %v1400 = vunpack.c.l.b16 %v1391
    %v1401 = vunpack.c.l.b16 %v1392
    %v1402 = vpack.c.b16 %v1399, %v1398
    %v1403 = vpack.c.b16 %v1401, %v1400
    %v1405 = vsel %vm47, %v1402, 0
    %v1408 = vsel %vm47, %v1403, 0
    %1410 = vmatpush.bf16.msra.mxu0 0
    %1411 = vmatpush.bf16.msra.mxu0 0
    %1412 = vmatpush.bf16.msra.mxu0 0
    %1413 = vmatpush.bf16.msra.mxu0 0
    %1414 = vmatpush.bf16.msra.mxu0 0
    %1415 = vmatpush.bf16.msra.mxu0 0
    %1416 = vmatpush.bf16.msra.mxu0 0
    %1417 = vmatpush.bf16.msra.mxu0 %v1393
    %1418 = vmatmul.bf16.gmra.mxu0 %v1405
    %v1419 = vpop.f32.mrf.mxu0
    %v1420 = vadd.f32 0.0, %v1419
    %v1421 = vpop.f32.mrf.mxu0
    %v1422 = vadd.f32 0.0, %v1421
    %1423 = vmatmul.bf16.gmra.mxu0 %v1408
    %v1424 = vpop.f32.mrf.mxu0
    %v1425 = vadd.f32 0.0, %v1424
    %v1426 = vpop.f32.mrf.mxu0
    %v1427 = vadd.f32 0.0, %v1426
    %1428 = vdwg.mxu0
    %v1429 = vpack.c.bf16 %v1420, %v1420
    %v1430 = vld [vmem:[#allocation2 + $0x320] sm:$0xf]
    %v1431 = vld [vmem:[#allocation2 + $0x324] sm:$0xf]
    %v1432 = vld [vmem:[#allocation2 + $0x328] sm:$0xf]
    %v1433 = vld [vmem:[#allocation2 + $0x32c] sm:$0xf]
    %v1434 = vld [vmem:[#allocation2 + $0x330] sm:$0xf]
    %v1435 = vld [vmem:[#allocation2 + $0x334] sm:$0xf]
    %v1436 = vld [vmem:[#allocation2 + $0x338] sm:$0xf]
    %v1437 = vld [vmem:[#allocation2 + $0x33c] sm:$0xf]
    %v1438 = vld [vmem:[#allocation2 + $0x340] sm:$0xf]
    %v1439 = vld [vmem:[#allocation2 + $0x344] sm:$0xf]
    %v1440 = vld [vmem:[#allocation2 + $0x348] sm:$0xf]
    %v1441 = vld [vmem:[#allocation2 + $0x34c] sm:$0xf]
    %v1442 = vld [vmem:[#allocation2 + $0x350] sm:$0xf]
    %v1443 = vld [vmem:[#allocation2 + $0x354] sm:$0xf]
    %v1444 = vld [vmem:[#allocation2 + $0x358] sm:$0xf]
    %v1445 = vld [vmem:[#allocation2 + $0x35c] sm:$0xf]
    %v1446 = vpack.c.bf16 %v1422, %v1422
    %v1447 = vld [vmem:[#allocation2 + $0x360] sm:$0xf]
    %v1448 = vld [vmem:[#allocation2 + $0x364] sm:$0xf]
    %v1449 = vld [vmem:[#allocation2 + $0x368] sm:$0xf]
    %v1450 = vld [vmem:[#allocation2 + $0x36c] sm:$0xf]
    %v1451 = vld [vmem:[#allocation2 + $0x370] sm:$0xf]
    %v1452 = vld [vmem:[#allocation2 + $0x374] sm:$0xf]
    %v1453 = vld [vmem:[#allocation2 + $0x378] sm:$0xf]
    %v1454 = vld [vmem:[#allocation2 + $0x37c] sm:$0xf]
    %v1455 = vld [vmem:[#allocation2 + $0x380] sm:$0xf]
    %v1456 = vld [vmem:[#allocation2 + $0x384] sm:$0xf]
    %v1457 = vld [vmem:[#allocation2 + $0x388] sm:$0xf]
    %v1458 = vld [vmem:[#allocation2 + $0x38c] sm:$0xf]
    %v1459 = vld [vmem:[#allocation2 + $0x390] sm:$0xf]
    %v1460 = vld [vmem:[#allocation2 + $0x394] sm:$0xf]
    %v1461 = vld [vmem:[#allocation2 + $0x398] sm:$0xf]
    %v1462 = vld [vmem:[#allocation2 + $0x39c] sm:$0xf]
    %v1479 = vunpack.c.l.b16 %v1447
    %v1480 = vunpack.c.l.b16 %v1448
    %v1481 = vunpack.c.l.b16 %v1449
    %v1482 = vunpack.c.l.b16 %v1450
    %v1483 = vunpack.c.l.b16 %v1451
    %v1484 = vunpack.c.l.b16 %v1452
    %v1485 = vunpack.c.l.b16 %v1453
    %v1486 = vunpack.c.l.b16 %v1454
    %v1487 = vunpack.c.l.b16 %v1455
    %v1488 = vunpack.c.l.b16 %v1456
    %v1489 = vunpack.c.l.b16 %v1457
    %v1490 = vunpack.c.l.b16 %v1458
    %v1491 = vunpack.c.l.b16 %v1459
    %v1492 = vunpack.c.l.b16 %v1460
    %v1493 = vunpack.c.l.b16 %v1461
    %v1494 = vunpack.c.l.b16 %v1462
    %v1495 = vpack.c.b16 %v1480, %v1479
    %v1496 = vpack.c.b16 %v1482, %v1481
    %v1497 = vpack.c.b16 %v1484, %v1483
    %v1498 = vpack.c.b16 %v1486, %v1485
    %v1499 = vpack.c.b16 %v1488, %v1487
    %v1500 = vpack.c.b16 %v1490, %v1489
    %v1501 = vpack.c.b16 %v1492, %v1491
    %v1502 = vpack.c.b16 %v1494, %v1493
    %1511 = vmatpush.bf16.msra.mxu0 %v1502
    %1512 = vmatpush.bf16.msra.mxu0 %v1501
    %1513 = vmatpush.bf16.msra.mxu0 %v1500
    %1514 = vmatpush.bf16.msra.mxu0 %v1499
    %1515 = vmatpush.bf16.msra.mxu0 %v1498
    %1516 = vmatpush.bf16.msra.mxu0 %v1497
    %1517 = vmatpush.bf16.msra.mxu0 %v1496
    %1518 = vmatpush.bf16.msra.mxu0 %v1495
    %1519 = vmatmul.bf16.gmra.mxu0 %v1446
    %v1520 = vpop.f32.mrf.mxu0
    %v1521 = vadd.f32 0.0, %v1520
    %v1522 = vpop.f32.mrf.mxu0
    %1523 = vdwg.mxu0
    %v1540 = vunpack.c.l.b16 %v1430
    %v1541 = vunpack.c.l.b16 %v1431
    %v1542 = vunpack.c.l.b16 %v1432
    %v1543 = vunpack.c.l.b16 %v1433
    %v1544 = vunpack.c.l.b16 %v1434
    %v1545 = vunpack.c.l.b16 %v1435
    %v1546 = vunpack.c.l.b16 %v1436
    %v1547 = vunpack.c.l.b16 %v1437
    %v1548 = vunpack.c.l.b16 %v1438
    %v1549 = vunpack.c.l.b16 %v1439
    %v1550 = vunpack.c.l.b16 %v1440
    %v1551 = vunpack.c.l.b16 %v1441
    %v1552 = vunpack.c.l.b16 %v1442
    %v1553 = vunpack.c.l.b16 %v1443
    %v1554 = vunpack.c.l.b16 %v1444
    %v1555 = vunpack.c.l.b16 %v1445
    %v1556 = vpack.c.b16 %v1541, %v1540
    %v1557 = vpack.c.b16 %v1543, %v1542
    %v1558 = vpack.c.b16 %v1545, %v1544
    %v1559 = vpack.c.b16 %v1547, %v1546
    %v1560 = vpack.c.b16 %v1549, %v1548
    %v1561 = vpack.c.b16 %v1551, %v1550
    %v1562 = vpack.c.b16 %v1553, %v1552
    %v1563 = vpack.c.b16 %v1555, %v1554
    %1572 = vmatpush.bf16.msra.mxu0 %v1563
    %1573 = vmatpush.bf16.msra.mxu0 %v1562
    %1574 = vmatpush.bf16.msra.mxu0 %v1561
    %1575 = vmatpush.bf16.msra.mxu0 %v1560
    %1576 = vmatpush.bf16.msra.mxu0 %v1559
    %1577 = vmatpush.bf16.msra.mxu0 %v1558
    %1578 = vmatpush.bf16.msra.mxu0 %v1557
    %1579 = vmatpush.bf16.msra.mxu0 %v1556
    %1580 = vmatmul.bf16.gmra.mxu0 %v1429
    %v1581 = vpop.f32.mrf.mxu0
    %v1582 = vadd.f32 %v1521, %v1581
    %v1583 = vpop.f32.mrf.mxu0
    %1584 = vdwg.mxu0
    %v1585 = vpack.c.bf16 %v1425, %v1425
    %v1586 = vld [vmem:[#allocation2 + $0x3a0] sm:$0xf]
    %v1587 = vld [vmem:[#allocation2 + $0x3a4] sm:$0xf]
    %v1588 = vld [vmem:[#allocation2 + $0x3a8] sm:$0xf]
    %v1589 = vld [vmem:[#allocation2 + $0x3ac] sm:$0xf]
    %v1590 = vld [vmem:[#allocation2 + $0x3b0] sm:$0xf]
    %v1591 = vld [vmem:[#allocation2 + $0x3b4] sm:$0xf]
    %v1592 = vld [vmem:[#allocation2 + $0x3b8] sm:$0xf]
    %v1593 = vld [vmem:[#allocation2 + $0x3bc] sm:$0xf]
    %v1594 = vld [vmem:[#allocation2 + $0x3c0] sm:$0xf]
    %v1595 = vld [vmem:[#allocation2 + $0x3c4] sm:$0xf]
    %v1596 = vld [vmem:[#allocation2 + $0x3c8] sm:$0xf]
    %v1597 = vld [vmem:[#allocation2 + $0x3cc] sm:$0xf]
    %v1598 = vld [vmem:[#allocation2 + $0x3d0] sm:$0xf]
    %v1599 = vld [vmem:[#allocation2 + $0x3d4] sm:$0xf]
    %v1600 = vld [vmem:[#allocation2 + $0x3d8] sm:$0xf]
    %v1601 = vld [vmem:[#allocation2 + $0x3dc] sm:$0xf]
    %v1618 = vunpack.c.l.b16 %v1586
    %v1619 = vunpack.c.l.b16 %v1587
    %v1620 = vunpack.c.l.b16 %v1588
    %v1621 = vunpack.c.l.b16 %v1589
    %v1622 = vunpack.c.l.b16 %v1590
    %v1623 = vunpack.c.l.b16 %v1591
    %v1624 = vunpack.c.l.b16 %v1592
    %v1625 = vunpack.c.l.b16 %v1593
    %v1626 = vunpack.c.l.b16 %v1594
    %v1627 = vunpack.c.l.b16 %v1595
    %v1628 = vunpack.c.l.b16 %v1596
    %v1629 = vunpack.c.l.b16 %v1597
    %v1630 = vunpack.c.l.b16 %v1598
    %v1631 = vunpack.c.l.b16 %v1599
    %v1632 = vunpack.c.l.b16 %v1600
    %v1633 = vunpack.c.l.b16 %v1601
    %v1634 = vpack.c.b16 %v1619, %v1618
    %v1635 = vpack.c.b16 %v1621, %v1620
    %v1636 = vpack.c.b16 %v1623, %v1622
    %v1637 = vpack.c.b16 %v1625, %v1624
    %v1638 = vpack.c.b16 %v1627, %v1626
    %v1639 = vpack.c.b16 %v1629, %v1628
    %v1640 = vpack.c.b16 %v1631, %v1630
    %v1641 = vpack.c.b16 %v1633, %v1632
    %1650 = vmatpush.bf16.msra.mxu0 %v1641
    %1651 = vmatpush.bf16.msra.mxu0 %v1640
    %1652 = vmatpush.bf16.msra.mxu0 %v1639
    %1653 = vmatpush.bf16.msra.mxu0 %v1638
    %1654 = vmatpush.bf16.msra.mxu0 %v1637
    %1655 = vmatpush.bf16.msra.mxu0 %v1636
    %1656 = vmatpush.bf16.msra.mxu0 %v1635
    %1657 = vmatpush.bf16.msra.mxu0 %v1634
    %1658 = vmatmul.bf16.gmra.mxu0 %v1585
    %v1659 = vpop.f32.mrf.mxu0
    %v1660 = vadd.f32 0.0, %v1659
    %v1661 = vpop.f32.mrf.mxu0
    %1662 = vdwg.mxu0
    %v1663 = vadd.f32 %v1582, %v1660
    %v1664 = vpack.c.bf16 %v1427, %v1427
    %v1665 = vld [vmem:[#allocation2 + $0x3e0] sm:$0xf]
    %v1666 = vld [vmem:[#allocation2 + $0x3e4] sm:$0xf]
    %v1667 = vld [vmem:[#allocation2 + $0x3e8] sm:$0xf]
    %v1668 = vld [vmem:[#allocation2 + $0x3ec] sm:$0xf]
    %v1669 = vld [vmem:[#allocation2 + $0x3f0] sm:$0xf]
    %v1670 = vld [vmem:[#allocation2 + $0x3f4] sm:$0xf]
    %v1671 = vld [vmem:[#allocation2 + $0x3f8] sm:$0xf]
    %v1672 = vld [vmem:[#allocation2 + $0x3fc] sm:$0xf]
    %v1673 = vld [vmem:[#allocation2 + $0x400] sm:$0xf]
    %v1674 = vld [vmem:[#allocation2 + $0x404] sm:$0xf]
    %v1675 = vld [vmem:[#allocation2 + $0x408] sm:$0xf]
    %v1676 = vld [vmem:[#allocation2 + $0x40c] sm:$0xf]
    %v1677 = vld [vmem:[#allocation2 + $0x410] sm:$0xf]
    %v1678 = vld [vmem:[#allocation2 + $0x414] sm:$0xf]
    %v1679 = vld [vmem:[#allocation2 + $0x418] sm:$0xf]
    %v1680 = vld [vmem:[#allocation2 + $0x41c] sm:$0xf]
    %v1697 = vunpack.c.l.b16 %v1665
    %v1698 = vunpack.c.l.b16 %v1666
    %v1699 = vunpack.c.l.b16 %v1667
    %v1700 = vunpack.c.l.b16 %v1668
    %v1701 = vunpack.c.l.b16 %v1669
    %v1702 = vunpack.c.l.b16 %v1670
    %v1703 = vunpack.c.l.b16 %v1671
    %v1704 = vunpack.c.l.b16 %v1672
    %v1705 = vunpack.c.l.b16 %v1673
    %v1706 = vunpack.c.l.b16 %v1674
    %v1707 = vunpack.c.l.b16 %v1675
    %v1708 = vunpack.c.l.b16 %v1676
    %v1709 = vunpack.c.l.b16 %v1677
    %v1710 = vunpack.c.l.b16 %v1678
    %v1711 = vunpack.c.l.b16 %v1679
    %v1712 = vunpack.c.l.b16 %v1680
    %v1713 = vpack.c.b16 %v1698, %v1697
    %v1714 = vpack.c.b16 %v1700, %v1699
    %v1715 = vpack.c.b16 %v1702, %v1701
    %v1716 = vpack.c.b16 %v1704, %v1703
    %v1717 = vpack.c.b16 %v1706, %v1705
    %v1718 = vpack.c.b16 %v1708, %v1707
    %v1719 = vpack.c.b16 %v1710, %v1709
    %v1720 = vpack.c.b16 %v1712, %v1711
    %1729 = vmatpush.bf16.msra.mxu0 %v1720
    %1730 = vmatpush.bf16.msra.mxu0 %v1719
    %1731 = vmatpush.bf16.msra.mxu0 %v1718
    %1732 = vmatpush.bf16.msra.mxu0 %v1717
    %1733 = vmatpush.bf16.msra.mxu0 %v1716
    %1734 = vmatpush.bf16.msra.mxu0 %v1715
    %1735 = vmatpush.bf16.msra.mxu0 %v1714
    %1736 = vmatpush.bf16.msra.mxu0 %v1713
    %1737 = vmatmul.bf16.gmra.mxu0 %v1664
    %v1738 = vpop.f32.mrf.mxu0
    %v1739 = vadd.f32 0.0, %v1738
    %v1740 = vpop.f32.mrf.mxu0
    %1741 = vdwg.mxu0
    %v1742 = vadd.f32 %v1663, %v1739
    %v1743 = vld [vmem:[%s3 + $0x28] sm:$0x1]
    %v1744 = vperm.slane %v1743, 0
    %v1745 = vadd.f32 %v1742, %v1744
    %v1746 = vadd.f32 %v1745, %v586
    %v1747 = vld [vmem:[%s1 + $0x70] sm:$0xf]
    %v1748 = vld [vmem:[%s1 + $0x74] sm:$0xf]
    %v1749 = vld [vmem:[%s1 + $0x78] sm:$0xf]
    %v1750 = vpack.c.bf16 %v1746, %v1746
    %v1754 = vunpack.c.l.b16 %v1747
    %v1755 = vunpack.c.l.b16 %v1748
    %v1756 = vunpack.c.l.b16 %v1749
    %v1757 = vpack.c.b16 %v1755, %v1754
    %v1758 = vpack.c.b16 %v1756, %v1756
    %v1760 = vsel %vm599, %v1757, 0
    %v1763 = vsel %vm599, %v1758, 0
    %v1766 = vsel %vm606, %v1750, 0
    %1768 = vmatpush.bf16.msra.mxu0 0
    %1769 = vmatpush.bf16.msra.mxu0 0
    %1770 = vmatpush.bf16.msra.mxu0 0
    %1771 = vmatpush.bf16.msra.mxu0 0
    %1772 = vmatpush.bf16.msra.mxu0 0
    %1773 = vmatpush.bf16.msra.mxu0 0
    %1774 = vmatpush.bf16.msra.mxu0 0
    %1775 = vmatpush.bf16.msra.mxu0 %v1766
    %1776 = vmatmul.bf16.gmra.mxu0 %v1760
    %v1777 = vpop.f32.mrf.mxu0
    %v1778 = vadd.f32 0.0, %v1777
    %v1779 = vpop.f32.mrf.mxu0
    %v1780 = vadd.f32 0.0, %v1779
    %1781 = vmatmul.bf16.gmra.mxu0 %v1763
    %v1782 = vpop.f32.mrf.mxu0
    %v1783 = vadd.f32 0.0, %v1782
    %v1784 = vpop.f32.mrf.mxu0
    %1785 = vdwg.mxu0
    %v1786 = vpack.c.bf16 %v1778, %v1778
    %v1787 = vld [vmem:[#allocation2 + $0x420] sm:$0xf]
    %v1788 = vld [vmem:[#allocation2 + $0x424] sm:$0xf]
    %v1789 = vld [vmem:[#allocation2 + $0x428] sm:$0xf]
    %v1790 = vld [vmem:[#allocation2 + $0x42c] sm:$0xf]
    %v1791 = vld [vmem:[#allocation2 + $0x430] sm:$0xf]
    %v1792 = vld [vmem:[#allocation2 + $0x434] sm:$0xf]
    %v1793 = vld [vmem:[#allocation2 + $0x438] sm:$0xf]
    %v1794 = vld [vmem:[#allocation2 + $0x43c] sm:$0xf]
    %v1795 = vld [vmem:[#allocation2 + $0x440] sm:$0xf]
    %v1796 = vld [vmem:[#allocation2 + $0x444] sm:$0xf]
    %v1797 = vld [vmem:[#allocation2 + $0x448] sm:$0xf]
    %v1798 = vld [vmem:[#allocation2 + $0x44c] sm:$0xf]
    %v1799 = vld [vmem:[#allocation2 + $0x450] sm:$0xf]
    %v1800 = vld [vmem:[#allocation2 + $0x454] sm:$0xf]
    %v1801 = vld [vmem:[#allocation2 + $0x458] sm:$0xf]
    %v1802 = vld [vmem:[#allocation2 + $0x45c] sm:$0xf]
    %v1803 = vpack.c.bf16 %v1780, %v1780
    %v1804 = vld [vmem:[#allocation2 + $0x460] sm:$0xf]
    %v1805 = vld [vmem:[#allocation2 + $0x464] sm:$0xf]
    %v1806 = vld [vmem:[#allocation2 + $0x468] sm:$0xf]
    %v1807 = vld [vmem:[#allocation2 + $0x46c] sm:$0xf]
    %v1808 = vld [vmem:[#allocation2 + $0x470] sm:$0xf]
    %v1809 = vld [vmem:[#allocation2 + $0x474] sm:$0xf]
    %v1810 = vld [vmem:[#allocation2 + $0x478] sm:$0xf]
    %v1811 = vld [vmem:[#allocation2 + $0x47c] sm:$0xf]
    %v1812 = vld [vmem:[#allocation2 + $0x480] sm:$0xf]
    %v1813 = vld [vmem:[#allocation2 + $0x484] sm:$0xf]
    %v1814 = vld [vmem:[#allocation2 + $0x488] sm:$0xf]
    %v1815 = vld [vmem:[#allocation2 + $0x48c] sm:$0xf]
    %v1816 = vld [vmem:[#allocation2 + $0x490] sm:$0xf]
    %v1817 = vld [vmem:[#allocation2 + $0x494] sm:$0xf]
    %v1818 = vld [vmem:[#allocation2 + $0x498] sm:$0xf]
    %v1819 = vld [vmem:[#allocation2 + $0x49c] sm:$0xf]
    %v1836 = vunpack.c.l.b16 %v1804
    %v1837 = vunpack.c.l.b16 %v1805
    %v1838 = vunpack.c.l.b16 %v1806
    %v1839 = vunpack.c.l.b16 %v1807
    %v1840 = vunpack.c.l.b16 %v1808
    %v1841 = vunpack.c.l.b16 %v1809
    %v1842 = vunpack.c.l.b16 %v1810
    %v1843 = vunpack.c.l.b16 %v1811
    %v1844 = vunpack.c.l.b16 %v1812
    %v1845 = vunpack.c.l.b16 %v1813
    %v1846 = vunpack.c.l.b16 %v1814
    %v1847 = vunpack.c.l.b16 %v1815
    %v1848 = vunpack.c.l.b16 %v1816
    %v1849 = vunpack.c.l.b16 %v1817
    %v1850 = vunpack.c.l.b16 %v1818
    %v1851 = vunpack.c.l.b16 %v1819
    %v1852 = vpack.c.b16 %v1837, %v1836
    %v1853 = vpack.c.b16 %v1839, %v1838
    %v1854 = vpack.c.b16 %v1841, %v1840
    %v1855 = vpack.c.b16 %v1843, %v1842
    %v1856 = vpack.c.b16 %v1845, %v1844
    %v1857 = vpack.c.b16 %v1847, %v1846
    %v1858 = vpack.c.b16 %v1849, %v1848
    %v1859 = vpack.c.b16 %v1851, %v1850
    %1868 = vmatpush.bf16.msra.mxu0 %v1859
    %1869 = vmatpush.bf16.msra.mxu0 %v1858
    %1870 = vmatpush.bf16.msra.mxu0 %v1857
    %1871 = vmatpush.bf16.msra.mxu0 %v1856
    %1872 = vmatpush.bf16.msra.mxu0 %v1855
    %1873 = vmatpush.bf16.msra.mxu0 %v1854
    %1874 = vmatpush.bf16.msra.mxu0 %v1853
    %1875 = vmatpush.bf16.msra.mxu0 %v1852
    %1876 = vmatmul.bf16.gmra.mxu0 %v1803
    %v1877 = vpop.f32.mrf.mxu0
    %v1878 = vadd.f32 0.0, %v1877
    %v1879 = vpop.f32.mrf.mxu0
    %1880 = vdwg.mxu0
    %v1897 = vunpack.c.l.b16 %v1787
    %v1898 = vunpack.c.l.b16 %v1788
    %v1899 = vunpack.c.l.b16 %v1789
    %v1900 = vunpack.c.l.b16 %v1790
    %v1901 = vunpack.c.l.b16 %v1791
    %v1902 = vunpack.c.l.b16 %v1792
    %v1903 = vunpack.c.l.b16 %v1793
    %v1904 = vunpack.c.l.b16 %v1794
    %v1905 = vunpack.c.l.b16 %v1795
    %v1906 = vunpack.c.l.b16 %v1796
    %v1907 = vunpack.c.l.b16 %v1797
    %v1908 = vunpack.c.l.b16 %v1798
    %v1909 = vunpack.c.l.b16 %v1799
    %v1910 = vunpack.c.l.b16 %v1800
    %v1911 = vunpack.c.l.b16 %v1801
    %v1912 = vunpack.c.l.b16 %v1802
    %v1913 = vpack.c.b16 %v1898, %v1897
    %v1914 = vpack.c.b16 %v1900, %v1899
    %v1915 = vpack.c.b16 %v1902, %v1901
    %v1916 = vpack.c.b16 %v1904, %v1903
    %v1917 = vpack.c.b16 %v1906, %v1905
    %v1918 = vpack.c.b16 %v1908, %v1907
    %v1919 = vpack.c.b16 %v1910, %v1909
    %v1920 = vpack.c.b16 %v1912, %v1911
    %1929 = vmatpush.bf16.msra.mxu0 %v1920
    %1930 = vmatpush.bf16.msra.mxu0 %v1919
    %1931 = vmatpush.bf16.msra.mxu0 %v1918
    %1932 = vmatpush.bf16.msra.mxu0 %v1917
    %1933 = vmatpush.bf16.msra.mxu0 %v1916
    %1934 = vmatpush.bf16.msra.mxu0 %v1915
    %1935 = vmatpush.bf16.msra.mxu0 %v1914
    %1936 = vmatpush.bf16.msra.mxu0 %v1913
    %1937 = vmatmul.bf16.gmra.mxu0 %v1786
    %v1938 = vpop.f32.mrf.mxu0
    %v1939 = vadd.f32 %v1878, %v1938
    %v1940 = vpop.f32.mrf.mxu0
    %1941 = vdwg.mxu0
    %v1942 = vpack.c.bf16 %v1783, %v1783
    %v1943 = vld [vmem:[#allocation2 + $0x4a0] sm:$0xf]
    %v1944 = vld [vmem:[#allocation2 + $0x4a4] sm:$0xf]
    %v1945 = vld [vmem:[#allocation2 + $0x4a8] sm:$0xf]
    %v1946 = vld [vmem:[#allocation2 + $0x4ac] sm:$0xf]
    %v1947 = vld [vmem:[#allocation2 + $0x4b0] sm:$0xf]
    %v1948 = vld [vmem:[#allocation2 + $0x4b4] sm:$0xf]
    %v1949 = vld [vmem:[#allocation2 + $0x4b8] sm:$0xf]
    %v1950 = vld [vmem:[#allocation2 + $0x4bc] sm:$0xf]
    %v1951 = vld [vmem:[#allocation2 + $0x4c0] sm:$0xf]
    %v1952 = vld [vmem:[#allocation2 + $0x4c4] sm:$0xf]
    %v1953 = vld [vmem:[#allocation2 + $0x4c8] sm:$0xf]
    %v1954 = vld [vmem:[#allocation2 + $0x4cc] sm:$0xf]
    %v1955 = vld [vmem:[#allocation2 + $0x4d0] sm:$0xf]
    %v1956 = vld [vmem:[#allocation2 + $0x4d4] sm:$0xf]
    %v1957 = vld [vmem:[#allocation2 + $0x4d8] sm:$0xf]
    %v1958 = vld [vmem:[#allocation2 + $0x4dc] sm:$0xf]
    %v1975 = vunpack.c.l.b16 %v1943
    %v1976 = vunpack.c.l.b16 %v1944
    %v1977 = vunpack.c.l.b16 %v1945
    %v1978 = vunpack.c.l.b16 %v1946
    %v1979 = vunpack.c.l.b16 %v1947
    %v1980 = vunpack.c.l.b16 %v1948
    %v1981 = vunpack.c.l.b16 %v1949
    %v1982 = vunpack.c.l.b16 %v1950
    %v1983 = vunpack.c.l.b16 %v1951
    %v1984 = vunpack.c.l.b16 %v1952
    %v1985 = vunpack.c.l.b16 %v1953
    %v1986 = vunpack.c.l.b16 %v1954
    %v1987 = vunpack.c.l.b16 %v1955
    %v1988 = vunpack.c.l.b16 %v1956
    %v1989 = vunpack.c.l.b16 %v1957
    %v1990 = vunpack.c.l.b16 %v1958
    %v1991 = vpack.c.b16 %v1976, %v1975
    %v1992 = vpack.c.b16 %v1978, %v1977
    %v1993 = vpack.c.b16 %v1980, %v1979
    %v1994 = vpack.c.b16 %v1982, %v1981
    %v1995 = vpack.c.b16 %v1984, %v1983
    %v1996 = vpack.c.b16 %v1986, %v1985
    %v1997 = vpack.c.b16 %v1988, %v1987
    %v1998 = vpack.c.b16 %v1990, %v1989
    %2007 = vmatpush.bf16.msra.mxu0 %v1998
    %2008 = vmatpush.bf16.msra.mxu0 %v1997
    %2009 = vmatpush.bf16.msra.mxu0 %v1996
    %2010 = vmatpush.bf16.msra.mxu0 %v1995
    %2011 = vmatpush.bf16.msra.mxu0 %v1994
    %2012 = vmatpush.bf16.msra.mxu0 %v1993
    %2013 = vmatpush.bf16.msra.mxu0 %v1992
    %2014 = vmatpush.bf16.msra.mxu0 %v1991
    %2015 = vmatmul.bf16.gmra.mxu0 %v1942
    %v2016 = vpop.f32.mrf.mxu0
    %v2017 = vadd.f32 0.0, %v2016
    %v2018 = vpop.f32.mrf.mxu0
    %2019 = vdwg.mxu0
    %v2020 = vadd.f32 %v1939, %v2017
    %v2021 = vld [vmem:[%s3 + $0x30] sm:$0x1]
    %v2022 = vperm.slane %v2021, 0
    %v2023 = vadd.f32 %v2020, %v2022
    %v2024 = vld [vmem:[%s1 + $0x80] sm:$0xf]
    %v2025 = vld [vmem:[%s1 + $0x84] sm:$0xf]
    %v2026 = vld [vmem:[%s1 + $0x88] sm:$0xf]
    %v2027 = vld [vmem:[%s1 + $0x8c] sm:$0xf]
    %v2028 = vpack.c.bf16 %v2023, %v2023
    %v2033 = vunpack.c.l.b16 %v2024
    %v2034 = vunpack.c.l.b16 %v2025
    %v2035 = vunpack.c.l.b16 %v2026
    %v2036 = vunpack.c.l.b16 %v2027
    %v2037 = vpack.c.b16 %v2034, %v2033
    %v2038 = vpack.c.b16 %v2036, %v2035
    %v2040 = vsel %vm599, %v2037, 0
    %v2043 = vsel %vm599, %v2038, 0
    %v2046 = vsel %vm606, %v2028, 0
    %2048 = vmatpush.bf16.msra.mxu0 0
    %2049 = vmatpush.bf16.msra.mxu0 0
    %2050 = vmatpush.bf16.msra.mxu0 0
    %2051 = vmatpush.bf16.msra.mxu0 0
    %2052 = vmatpush.bf16.msra.mxu0 0
    %2053 = vmatpush.bf16.msra.mxu0 0
    %2054 = vmatpush.bf16.msra.mxu0 0
    %2055 = vmatpush.bf16.msra.mxu0 %v2046
    %2056 = vmatmul.bf16.gmra.mxu0 %v2040
    %v2057 = vpop.f32.mrf.mxu0
    %v2058 = vadd.f32 0.0, %v2057
    %v2059 = vpop.f32.mrf.mxu0
    %v2060 = vadd.f32 0.0, %v2059
    %2061 = vmatmul.bf16.gmra.mxu0 %v2043
    %v2062 = vpop.f32.mrf.mxu0
    %v2063 = vadd.f32 0.0, %v2062
    %v2064 = vpop.f32.mrf.mxu0
    %v2065 = vadd.f32 0.0, %v2064
    %2066 = vdwg.mxu0
    %v2067 = vpack.c.bf16 %v2058, %v2058
    %v2068 = vld [vmem:[#allocation2 + $0x4e0] sm:$0xf]
    %v2069 = vld [vmem:[#allocation2 + $0x4e4] sm:$0xf]
    %v2070 = vld [vmem:[#allocation2 + $0x4e8] sm:$0xf]
    %v2071 = vld [vmem:[#allocation2 + $0x4ec] sm:$0xf]
    %v2072 = vld [vmem:[#allocation2 + $0x4f0] sm:$0xf]
    %v2073 = vld [vmem:[#allocation2 + $0x4f4] sm:$0xf]
    %v2074 = vld [vmem:[#allocation2 + $0x4f8] sm:$0xf]
    %v2075 = vld [vmem:[#allocation2 + $0x4fc] sm:$0xf]
    %v2076 = vld [vmem:[#allocation2 + $0x500] sm:$0xf]
    %v2077 = vld [vmem:[#allocation2 + $0x504] sm:$0xf]
    %v2078 = vld [vmem:[#allocation2 + $0x508] sm:$0xf]
    %v2079 = vld [vmem:[#allocation2 + $0x50c] sm:$0xf]
    %v2080 = vld [vmem:[#allocation2 + $0x510] sm:$0xf]
    %v2081 = vld [vmem:[#allocation2 + $0x514] sm:$0xf]
    %v2082 = vld [vmem:[#allocation2 + $0x518] sm:$0xf]
    %v2083 = vld [vmem:[#allocation2 + $0x51c] sm:$0xf]
    %v2084 = vpack.c.bf16 %v2060, %v2060
    %v2085 = vld [vmem:[#allocation2 + $0x520] sm:$0xf]
    %v2086 = vld [vmem:[#allocation2 + $0x524] sm:$0xf]
    %v2087 = vld [vmem:[#allocation2 + $0x528] sm:$0xf]
    %v2088 = vld [vmem:[#allocation2 + $0x52c] sm:$0xf]
    %v2089 = vld [vmem:[#allocation2 + $0x530] sm:$0xf]
    %v2090 = vld [vmem:[#allocation2 + $0x534] sm:$0xf]
    %v2091 = vld [vmem:[#allocation2 + $0x538] sm:$0xf]
    %v2092 = vld [vmem:[#allocation2 + $0x53c] sm:$0xf]
    %v2093 = vld [vmem:[#allocation2 + $0x540] sm:$0xf]
    %v2094 = vld [vmem:[#allocation2 + $0x544] sm:$0xf]
    %v2095 = vld [vmem:[#allocation2 + $0x548] sm:$0xf]
    %v2096 = vld [vmem:[#allocation2 + $0x54c] sm:$0xf]
    %v2097 = vld [vmem:[#allocation2 + $0x550] sm:$0xf]
    %v2098 = vld [vmem:[#allocation2 + $0x554] sm:$0xf]
    %v2099 = vld [vmem:[#allocation2 + $0x558] sm:$0xf]
    %v2100 = vld [vmem:[#allocation2 + $0x55c] sm:$0xf]
    %v2117 = vunpack.c.l.b16 %v2085
    %v2118 = vunpack.c.l.b16 %v2086
    %v2119 = vunpack.c.l.b16 %v2087
    %v2120 = vunpack.c.l.b16 %v2088
    %v2121 = vunpack.c.l.b16 %v2089
    %v2122 = vunpack.c.l.b16 %v2090
    %v2123 = vunpack.c.l.b16 %v2091
    %v2124 = vunpack.c.l.b16 %v2092
    %v2125 = vunpack.c.l.b16 %v2093
    %v2126 = vunpack.c.l.b16 %v2094
    %v2127 = vunpack.c.l.b16 %v2095
    %v2128 = vunpack.c.l.b16 %v2096
    %v2129 = vunpack.c.l.b16 %v2097
    %v2130 = vunpack.c.l.b16 %v2098
    %v2131 = vunpack.c.l.b16 %v2099
    %v2132 = vunpack.c.l.b16 %v2100
    %v2133 = vpack.c.b16 %v2118, %v2117
    %v2134 = vpack.c.b16 %v2120, %v2119
    %v2135 = vpack.c.b16 %v2122, %v2121
    %v2136 = vpack.c.b16 %v2124, %v2123
    %v2137 = vpack.c.b16 %v2126, %v2125
    %v2138 = vpack.c.b16 %v2128, %v2127
    %v2139 = vpack.c.b16 %v2130, %v2129
    %v2140 = vpack.c.b16 %v2132, %v2131
    %2149 = vmatpush.bf16.msra.mxu0 %v2140
    %2150 = vmatpush.bf16.msra.mxu0 %v2139
    %2151 = vmatpush.bf16.msra.mxu0 %v2138
    %2152 = vmatpush.bf16.msra.mxu0 %v2137
    %2153 = vmatpush.bf16.msra.mxu0 %v2136
    %2154 = vmatpush.bf16.msra.mxu0 %v2135
    %2155 = vmatpush.bf16.msra.mxu0 %v2134
    %2156 = vmatpush.bf16.msra.mxu0 %v2133
    %2157 = vmatmul.bf16.gmra.mxu0 %v2084
    %v2158 = vpop.f32.mrf.mxu0
    %v2159 = vadd.f32 0.0, %v2158
    %v2160 = vpop.f32.mrf.mxu0
    %2161 = vdwg.mxu0
    %v2178 = vunpack.c.l.b16 %v2068
    %v2179 = vunpack.c.l.b16 %v2069
    %v2180 = vunpack.c.l.b16 %v2070
    %v2181 = vunpack.c.l.b16 %v2071
    %v2182 = vunpack.c.l.b16 %v2072
    %v2183 = vunpack.c.l.b16 %v2073
    %v2184 = vunpack.c.l.b16 %v2074
    %v2185 = vunpack.c.l.b16 %v2075
    %v2186 = vunpack.c.l.b16 %v2076
    %v2187 = vunpack.c.l.b16 %v2077
    %v2188 = vunpack.c.l.b16 %v2078
    %v2189 = vunpack.c.l.b16 %v2079
    %v2190 = vunpack.c.l.b16 %v2080
    %v2191 = vunpack.c.l.b16 %v2081
    %v2192 = vunpack.c.l.b16 %v2082
    %v2193 = vunpack.c.l.b16 %v2083
    %v2194 = vpack.c.b16 %v2179, %v2178
    %v2195 = vpack.c.b16 %v2181, %v2180
    %v2196 = vpack.c.b16 %v2183, %v2182
    %v2197 = vpack.c.b16 %v2185, %v2184
    %v2198 = vpack.c.b16 %v2187, %v2186
    %v2199 = vpack.c.b16 %v2189, %v2188
    %v2200 = vpack.c.b16 %v2191, %v2190
    %v2201 = vpack.c.b16 %v2193, %v2192
    %2210 = vmatpush.bf16.msra.mxu0 %v2201
    %2211 = vmatpush.bf16.msra.mxu0 %v2200
    %2212 = vmatpush.bf16.msra.mxu0 %v2199
    %2213 = vmatpush.bf16.msra.mxu0 %v2198
    %2214 = vmatpush.bf16.msra.mxu0 %v2197
    %2215 = vmatpush.bf16.msra.mxu0 %v2196
    %2216 = vmatpush.bf16.msra.mxu0 %v2195
    %2217 = vmatpush.bf16.msra.mxu0 %v2194
    %2218 = vmatmul.bf16.gmra.mxu0 %v2067
    %v2219 = vpop.f32.mrf.mxu0
    %v2220 = vadd.f32 %v2159, %v2219
    %v2221 = vpop.f32.mrf.mxu0
    %2222 = vdwg.mxu0
    %v2223 = vpack.c.bf16 %v2063, %v2063
    %v2224 = vld [vmem:[#allocation2 + $0x560] sm:$0xf]
    %v2225 = vld [vmem:[#allocation2 + $0x564] sm:$0xf]
    %v2226 = vld [vmem:[#allocation2 + $0x568] sm:$0xf]
    %v2227 = vld [vmem:[#allocation2 + $0x56c] sm:$0xf]
    %v2228 = vld [vmem:[#allocation2 + $0x570] sm:$0xf]
    %v2229 = vld [vmem:[#allocation2 + $0x574] sm:$0xf]
    %v2230 = vld [vmem:[#allocation2 + $0x578] sm:$0xf]
    %v2231 = vld [vmem:[#allocation2 + $0x57c] sm:$0xf]
    %v2232 = vld [vmem:[#allocation2 + $0x580] sm:$0xf]
    %v2233 = vld [vmem:[#allocation2 + $0x584] sm:$0xf]
    %v2234 = vld [vmem:[#allocation2 + $0x588] sm:$0xf]
    %v2235 = vld [vmem:[#allocation2 + $0x58c] sm:$0xf]
    %v2236 = vld [vmem:[#allocation2 + $0x590] sm:$0xf]
    %v2237 = vld [vmem:[#allocation2 + $0x594] sm:$0xf]
    %v2238 = vld [vmem:[#allocation2 + $0x598] sm:$0xf]
    %v2239 = vld [vmem:[#allocation2 + $0x59c] sm:$0xf]
    %v2256 = vunpack.c.l.b16 %v2224
    %v2257 = vunpack.c.l.b16 %v2225
    %v2258 = vunpack.c.l.b16 %v2226
    %v2259 = vunpack.c.l.b16 %v2227
    %v2260 = vunpack.c.l.b16 %v2228
    %v2261 = vunpack.c.l.b16 %v2229
    %v2262 = vunpack.c.l.b16 %v2230
    %v2263 = vunpack.c.l.b16 %v2231
    %v2264 = vunpack.c.l.b16 %v2232
    %v2265 = vunpack.c.l.b16 %v2233
    %v2266 = vunpack.c.l.b16 %v2234
    %v2267 = vunpack.c.l.b16 %v2235
    %v2268 = vunpack.c.l.b16 %v2236
    %v2269 = vunpack.c.l.b16 %v2237
    %v2270 = vunpack.c.l.b16 %v2238
    %v2271 = vunpack.c.l.b16 %v2239
    %v2272 = vpack.c.b16 %v2257, %v2256
    %v2273 = vpack.c.b16 %v2259, %v2258
    %v2274 = vpack.c.b16 %v2261, %v2260
    %v2275 = vpack.c.b16 %v2263, %v2262
    %v2276 = vpack.c.b16 %v2265, %v2264
    %v2277 = vpack.c.b16 %v2267, %v2266
    %v2278 = vpack.c.b16 %v2269, %v2268
    %v2279 = vpack.c.b16 %v2271, %v2270
    %2288 = vmatpush.bf16.msra.mxu0 %v2279
    %2289 = vmatpush.bf16.msra.mxu0 %v2278
    %2290 = vmatpush.bf16.msra.mxu0 %v2277
    %2291 = vmatpush.bf16.msra.mxu0 %v2276
    %2292 = vmatpush.bf16.msra.mxu0 %v2275
    %2293 = vmatpush.bf16.msra.mxu0 %v2274
    %2294 = vmatpush.bf16.msra.mxu0 %v2273
    %2295 = vmatpush.bf16.msra.mxu0 %v2272
    %2296 = vmatmul.bf16.gmra.mxu0 %v2223
    %v2297 = vpop.f32.mrf.mxu0
    %v2298 = vadd.f32 0.0, %v2297
    %v2299 = vpop.f32.mrf.mxu0
    %2300 = vdwg.mxu0
    %v2301 = vadd.f32 %v2220, %v2298
    %v2302 = vpack.c.bf16 %v2065, %v2065
    %v2303 = vld [vmem:[#allocation2 + $0x5a0] sm:$0xf]
    %v2304 = vld [vmem:[#allocation2 + $0x5a4] sm:$0xf]
    %v2305 = vld [vmem:[#allocation2 + $0x5a8] sm:$0xf]
    %v2306 = vld [vmem:[#allocation2 + $0x5ac] sm:$0xf]
    %v2307 = vld [vmem:[#allocation2 + $0x5b0] sm:$0xf]
    %v2308 = vld [vmem:[#allocation2 + $0x5b4] sm:$0xf]
    %v2309 = vld [vmem:[#allocation2 + $0x5b8] sm:$0xf]
    %v2310 = vld [vmem:[#allocation2 + $0x5bc] sm:$0xf]
    %v2311 = vld [vmem:[#allocation2 + $0x5c0] sm:$0xf]
    %v2312 = vld [vmem:[#allocation2 + $0x5c4] sm:$0xf]
    %v2313 = vld [vmem:[#allocation2 + $0x5c8] sm:$0xf]
    %v2314 = vld [vmem:[#allocation2 + $0x5cc] sm:$0xf]
    %v2315 = vld [vmem:[#allocation2 + $0x5d0] sm:$0xf]
    %v2316 = vld [vmem:[#allocation2 + $0x5d4] sm:$0xf]
    %v2317 = vld [vmem:[#allocation2 + $0x5d8] sm:$0xf]
    %v2318 = vld [vmem:[#allocation2 + $0x5dc] sm:$0xf]
    %v2335 = vunpack.c.l.b16 %v2303
    %v2336 = vunpack.c.l.b16 %v2304
    %v2337 = vunpack.c.l.b16 %v2305
    %v2338 = vunpack.c.l.b16 %v2306
    %v2339 = vunpack.c.l.b16 %v2307
    %v2340 = vunpack.c.l.b16 %v2308
    %v2341 = vunpack.c.l.b16 %v2309
    %v2342 = vunpack.c.l.b16 %v2310
    %v2343 = vunpack.c.l.b16 %v2311
    %v2344 = vunpack.c.l.b16 %v2312
    %v2345 = vunpack.c.l.b16 %v2313
    %v2346 = vunpack.c.l.b16 %v2314
    %v2347 = vunpack.c.l.b16 %v2315
    %v2348 = vunpack.c.l.b16 %v2316
    %v2349 = vunpack.c.l.b16 %v2317
    %v2350 = vunpack.c.l.b16 %v2318
    %v2351 = vpack.c.b16 %v2336, %v2335
    %v2352 = vpack.c.b16 %v2338, %v2337
    %v2353 = vpack.c.b16 %v2340, %v2339
    %v2354 = vpack.c.b16 %v2342, %v2341
    %v2355 = vpack.c.b16 %v2344, %v2343
    %v2356 = vpack.c.b16 %v2346, %v2345
    %v2357 = vpack.c.b16 %v2348, %v2347
    %v2358 = vpack.c.b16 %v2350, %v2349
    %2367 = vmatpush.bf16.msra.mxu0 %v2358
    %2368 = vmatpush.bf16.msra.mxu0 %v2357
    %2369 = vmatpush.bf16.msra.mxu0 %v2356
    %2370 = vmatpush.bf16.msra.mxu0 %v2355
    %2371 = vmatpush.bf16.msra.mxu0 %v2354
    %2372 = vmatpush.bf16.msra.mxu0 %v2353
    %2373 = vmatpush.bf16.msra.mxu0 %v2352
    %2374 = vmatpush.bf16.msra.mxu0 %v2351
    %2375 = vmatmul.bf16.gmra.mxu0 %v2302
    %v2376 = vpop.f32.mrf.mxu0
    %v2377 = vadd.f32 0.0, %v2376
    %v2378 = vpop.f32.mrf.mxu0
    %2379 = vdwg.mxu0
    %v2380 = vadd.f32 %v2301, %v2377
    %v2381 = vld [vmem:[%s3 + $0x38] sm:$0x1]
    %v2382 = vperm.slane %v2381, 0
    %v2383 = vadd.f32 %v2380, %v2382
    %v2384 = vadd.f32 %v2383, %v1225
    %v2385 = vld [vmem:[%s1 + $0x90] sm:$0xf]
    %v2386 = vld [vmem:[%s1 + $0x94] sm:$0xf]
    %v2387 = vld [vmem:[%s1 + $0x98] sm:$0xf]
    %v2388 = vpack.c.bf16 %v2384, %v2384
    %v2392 = vunpack.c.l.b16 %v2385
    %v2393 = vunpack.c.l.b16 %v2386
    %v2394 = vunpack.c.l.b16 %v2387
    %v2395 = vpack.c.b16 %v2393, %v2392
    %v2396 = vpack.c.b16 %v2394, %v2394
    %vm2397 = vcmask 31744
    %v2399 = vsel %vm2397, %v2395, 0
    %v2402 = vsel %vm2397, %v2396, 0
    %vm2404 = vcmask 1041408
    %v2406 = vsel %vm2404, %v2388, 0
    %2408 = vmatpush.bf16.msra.mxu0 0
    %2409 = vmatpush.bf16.msra.mxu0 0
    %2410 = vmatpush.bf16.msra.mxu0 0
    %2411 = vmatpush.bf16.msra.mxu0 0
    %2412 = vmatpush.bf16.msra.mxu0 0
    %2413 = vmatpush.bf16.msra.mxu0 0
    %2414 = vmatpush.bf16.msra.mxu0 0
    %2415 = vmatpush.bf16.msra.mxu0 %v2406
    %2416 = vmatmul.bf16.gmra.mxu0 %v2399
    %v2417 = vpop.f32.mrf.mxu0
    %v2418 = vadd.f32 0.0, %v2417
    %v2419 = vpop.f32.mrf.mxu0
    %v2420 = vadd.f32 0.0, %v2419
    %2421 = vmatmul.bf16.gmra.mxu0 %v2402
    %v2422 = vpop.f32.mrf.mxu0
    %v2423 = vadd.f32 0.0, %v2422
    %v2424 = vpop.f32.mrf.mxu0
    %2425 = vdwg.mxu0
    %v2426 = vpack.c.bf16 %v2418, %v2418
    %v2427 = vld [vmem:[#allocation2 + $0x5e0] sm:$0xf]
    %v2428 = vld [vmem:[#allocation2 + $0x5e4] sm:$0xf]
    %v2429 = vld [vmem:[#allocation2 + $0x5e8] sm:$0xf]
    %v2430 = vld [vmem:[#allocation2 + $0x5ec] sm:$0xf]
    %v2431 = vld [vmem:[#allocation2 + $0x5f0] sm:$0xf]
    %v2432 = vld [vmem:[#allocation2 + $0x5f4] sm:$0xf]
    %v2433 = vld [vmem:[#allocation2 + $0x5f8] sm:$0xf]
    %v2434 = vld [vmem:[#allocation2 + $0x5fc] sm:$0xf]
    %v2435 = vld [vmem:[#allocation2 + $0x600] sm:$0xf]
    %v2436 = vld [vmem:[#allocation2 + $0x604] sm:$0xf]
    %v2437 = vld [vmem:[#allocation2 + $0x608] sm:$0xf]
    %v2438 = vld [vmem:[#allocation2 + $0x60c] sm:$0xf]
    %v2439 = vld [vmem:[#allocation2 + $0x610] sm:$0xf]
    %v2440 = vld [vmem:[#allocation2 + $0x614] sm:$0xf]
    %v2441 = vld [vmem:[#allocation2 + $0x618] sm:$0xf]
    %v2442 = vld [vmem:[#allocation2 + $0x61c] sm:$0xf]
    %v2443 = vpack.c.bf16 %v2420, %v2420
    %v2444 = vld [vmem:[#allocation2 + $0x620] sm:$0xf]
    %v2445 = vld [vmem:[#allocation2 + $0x624] sm:$0xf]
    %v2446 = vld [vmem:[#allocation2 + $0x628] sm:$0xf]
    %v2447 = vld [vmem:[#allocation2 + $0x62c] sm:$0xf]
    %v2448 = vld [vmem:[#allocation2 + $0x630] sm:$0xf]
    %v2449 = vld [vmem:[#allocation2 + $0x634] sm:$0xf]
    %v2450 = vld [vmem:[#allocation2 + $0x638] sm:$0xf]
    %v2451 = vld [vmem:[#allocation2 + $0x63c] sm:$0xf]
    %v2452 = vld [vmem:[#allocation2 + $0x640] sm:$0xf]
    %v2453 = vld [vmem:[#allocation2 + $0x644] sm:$0xf]
    %v2454 = vld [vmem:[#allocation2 + $0x648] sm:$0xf]
    %v2455 = vld [vmem:[#allocation2 + $0x64c] sm:$0xf]
    %v2456 = vld [vmem:[#allocation2 + $0x650] sm:$0xf]
    %v2457 = vld [vmem:[#allocation2 + $0x654] sm:$0xf]
    %v2458 = vld [vmem:[#allocation2 + $0x658] sm:$0xf]
    %v2459 = vld [vmem:[#allocation2 + $0x65c] sm:$0xf]
    %v2476 = vunpack.c.l.b16 %v2444
    %v2477 = vunpack.c.l.b16 %v2445
    %v2478 = vunpack.c.l.b16 %v2446
    %v2479 = vunpack.c.l.b16 %v2447
    %v2480 = vunpack.c.l.b16 %v2448
    %v2481 = vunpack.c.l.b16 %v2449
    %v2482 = vunpack.c.l.b16 %v2450
    %v2483 = vunpack.c.l.b16 %v2451
    %v2484 = vunpack.c.l.b16 %v2452
    %v2485 = vunpack.c.l.b16 %v2453
    %v2486 = vunpack.c.l.b16 %v2454
    %v2487 = vunpack.c.l.b16 %v2455
    %v2488 = vunpack.c.l.b16 %v2456
    %v2489 = vunpack.c.l.b16 %v2457
    %v2490 = vunpack.c.l.b16 %v2458
    %v2491 = vunpack.c.l.b16 %v2459
    %v2492 = vpack.c.b16 %v2477, %v2476
    %v2493 = vpack.c.b16 %v2479, %v2478
    %v2494 = vpack.c.b16 %v2481, %v2480
    %v2495 = vpack.c.b16 %v2483, %v2482
    %v2496 = vpack.c.b16 %v2485, %v2484
    %v2497 = vpack.c.b16 %v2487, %v2486
    %v2498 = vpack.c.b16 %v2489, %v2488
    %v2499 = vpack.c.b16 %v2491, %v2490
    %2508 = vmatpush.bf16.msra.mxu0 %v2499
    %2509 = vmatpush.bf16.msra.mxu0 %v2498
    %2510 = vmatpush.bf16.msra.mxu0 %v2497
    %2511 = vmatpush.bf16.msra.mxu0 %v2496
    %2512 = vmatpush.bf16.msra.mxu0 %v2495
    %2513 = vmatpush.bf16.msra.mxu0 %v2494
    %2514 = vmatpush.bf16.msra.mxu0 %v2493
    %2515 = vmatpush.bf16.msra.mxu0 %v2492
    %2516 = vmatmul.bf16.gmra.mxu0 %v2443
    %v2517 = vpop.f32.mrf.mxu0
    %v2518 = vadd.f32 0.0, %v2517
    %v2519 = vpop.f32.mrf.mxu0
    %2520 = vdwg.mxu0
    %v2537 = vunpack.c.l.b16 %v2427
    %v2538 = vunpack.c.l.b16 %v2428
    %v2539 = vunpack.c.l.b16 %v2429
    %v2540 = vunpack.c.l.b16 %v2430
    %v2541 = vunpack.c.l.b16 %v2431
    %v2542 = vunpack.c.l.b16 %v2432
    %v2543 = vunpack.c.l.b16 %v2433
    %v2544 = vunpack.c.l.b16 %v2434
    %v2545 = vunpack.c.l.b16 %v2435
    %v2546 = vunpack.c.l.b16 %v2436
    %v2547 = vunpack.c.l.b16 %v2437
    %v2548 = vunpack.c.l.b16 %v2438
    %v2549 = vunpack.c.l.b16 %v2439
    %v2550 = vunpack.c.l.b16 %v2440
    %v2551 = vunpack.c.l.b16 %v2441
    %v2552 = vunpack.c.l.b16 %v2442
    %v2553 = vpack.c.b16 %v2538, %v2537
    %v2554 = vpack.c.b16 %v2540, %v2539
    %v2555 = vpack.c.b16 %v2542, %v2541
    %v2556 = vpack.c.b16 %v2544, %v2543
    %v2557 = vpack.c.b16 %v2546, %v2545
    %v2558 = vpack.c.b16 %v2548, %v2547
    %v2559 = vpack.c.b16 %v2550, %v2549
    %v2560 = vpack.c.b16 %v2552, %v2551
    %2569 = vmatpush.bf16.msra.mxu0 %v2560
    %2570 = vmatpush.bf16.msra.mxu0 %v2559
    %2571 = vmatpush.bf16.msra.mxu0 %v2558
    %2572 = vmatpush.bf16.msra.mxu0 %v2557
    %2573 = vmatpush.bf16.msra.mxu0 %v2556
    %2574 = vmatpush.bf16.msra.mxu0 %v2555
    %2575 = vmatpush.bf16.msra.mxu0 %v2554
    %2576 = vmatpush.bf16.msra.mxu0 %v2553
    %2577 = vmatmul.bf16.gmra.mxu0 %v2426
    %v2578 = vpop.f32.mrf.mxu0
    %v2579 = vadd.f32 %v2518, %v2578
    %v2580 = vpop.f32.mrf.mxu0
    %2581 = vdwg.mxu0
    %v2582 = vpack.c.bf16 %v2423, %v2423
    %v2583 = vld [vmem:[#allocation2 + $0x660] sm:$0xf]
    %v2584 = vld [vmem:[#allocation2 + $0x664] sm:$0xf]
    %v2585 = vld [vmem:[#allocation2 + $0x668] sm:$0xf]
    %v2586 = vld [vmem:[#allocation2 + $0x66c] sm:$0xf]
    %v2587 = vld [vmem:[#allocation2 + $0x670] sm:$0xf]
    %v2588 = vld [vmem:[#allocation2 + $0x674] sm:$0xf]
    %v2589 = vld [vmem:[#allocation2 + $0x678] sm:$0xf]
    %v2590 = vld [vmem:[#allocation2 + $0x67c] sm:$0xf]
    %v2591 = vld [vmem:[#allocation2 + $0x680] sm:$0xf]
    %v2592 = vld [vmem:[#allocation2 + $0x684] sm:$0xf]
    %v2593 = vld [vmem:[#allocation2 + $0x688] sm:$0xf]
    %v2594 = vld [vmem:[#allocation2 + $0x68c] sm:$0xf]
    %v2595 = vld [vmem:[#allocation2 + $0x690] sm:$0xf]
    %v2596 = vld [vmem:[#allocation2 + $0x694] sm:$0xf]
    %v2597 = vld [vmem:[#allocation2 + $0x698] sm:$0xf]
    %v2598 = vld [vmem:[#allocation2 + $0x69c] sm:$0xf]
    %v2615 = vunpack.c.l.b16 %v2583
    %v2616 = vunpack.c.l.b16 %v2584
    %v2617 = vunpack.c.l.b16 %v2585
    %v2618 = vunpack.c.l.b16 %v2586
    %v2619 = vunpack.c.l.b16 %v2587
    %v2620 = vunpack.c.l.b16 %v2588
    %v2621 = vunpack.c.l.b16 %v2589
    %v2622 = vunpack.c.l.b16 %v2590
    %v2623 = vunpack.c.l.b16 %v2591
    %v2624 = vunpack.c.l.b16 %v2592
    %v2625 = vunpack.c.l.b16 %v2593
    %v2626 = vunpack.c.l.b16 %v2594
    %v2627 = vunpack.c.l.b16 %v2595
    %v2628 = vunpack.c.l.b16 %v2596
    %v2629 = vunpack.c.l.b16 %v2597
    %v2630 = vunpack.c.l.b16 %v2598
    %v2631 = vpack.c.b16 %v2616, %v2615
    %v2632 = vpack.c.b16 %v2618, %v2617
    %v2633 = vpack.c.b16 %v2620, %v2619
    %v2634 = vpack.c.b16 %v2622, %v2621
    %v2635 = vpack.c.b16 %v2624, %v2623
    %v2636 = vpack.c.b16 %v2626, %v2625
    %v2637 = vpack.c.b16 %v2628, %v2627
    %v2638 = vpack.c.b16 %v2630, %v2629
    %2647 = vmatpush.bf16.msra.mxu0 %v2638
    %2648 = vmatpush.bf16.msra.mxu0 %v2637
    %2649 = vmatpush.bf16.msra.mxu0 %v2636
    %2650 = vmatpush.bf16.msra.mxu0 %v2635
    %2651 = vmatpush.bf16.msra.mxu0 %v2634
    %2652 = vmatpush.bf16.msra.mxu0 %v2633
    %2653 = vmatpush.bf16.msra.mxu0 %v2632
    %2654 = vmatpush.bf16.msra.mxu0 %v2631
    %2655 = vmatmul.bf16.gmra.mxu0 %v2582
    %v2656 = vpop.f32.mrf.mxu0
    %v2657 = vadd.f32 0.0, %v2656
    %v2658 = vpop.f32.mrf.mxu0
    %2659 = vdwg.mxu0
    %v2660 = vadd.f32 %v2579, %v2657
    %v2661 = vld [vmem:[%s3 + $0x40] sm:$0x1]
    %v2662 = vperm.slane %v2661, 0
    %v2663 = vadd.f32 %v2660, %v2662
    %2664 = vst [vmem:[%s4] sm:$0xf] %v2663
    // Predicated region
    $region22: #{encoder_forward.1} parent=1 // pred_check
      _
    $region23: #{encoder_forward.1} parent=1 // pred_check_branch
      %2666 = sbr.rel (0) target = $region25
    $region24: #{encoder_forward.1} parent=1 // pred_region
      _
    $region25: #{encoder_forward.1} parent=1 // pred_fallthru
      _
    // Predicated region
    $region26: #{encoder_forward.1} parent=1 // pred_check
      _
    $region27: #{encoder_forward.1} parent=1 // pred_check_branch
      %2668 = sbr.rel (0) target = $region29
    $region28: #{encoder_forward.1} parent=1 // pred_region
      _
    $region29: #{encoder_forward.1} parent=1 // pred_fallthru
      _
    %2669 = vsyncpa [#allocation3], 1

</llo_original>
